<compile_context>
chip_gen: v6e
topology: v6e:2x2x1
jax: 0.10.0
libtpu: 0.0.40
codegen_flags: <defaults>
</compile_context>

<pallas_src>
import functools

import jax
import jax.numpy as jnp
from jax.experimental import pallas as pl
from jax.experimental.pallas import tpu as pltpu

_BN_EPS = 1e-5
_LEAKY_SLOPE = 0.01
# bf16 MXU inputs with f32 accumulation (native MXU rate on v5e/v6e/v7x).
# Set to jnp.float32 for ~1e-5 agreement with an f32 reference.
_MATMUL_DTYPE = jnp.bfloat16

_LANE = 128        # packed weight buffer lane width (>= max Cin of any layer)
_WROW_ALIGN = 16   # bf16 packed-sublane alignment for per-tap row offsets
_GROW_ALIGN = 8    # f32 sublane alignment for gamma/beta row offsets


# --------------------------------------------------------------------------- #
# Kernel
# --------------------------------------------------------------------------- #
def _fused_gener_kernel(x_ref, w_ref, g_ref, o_ref, *, layers, ksize, seg):
    """Entire GenerConv1d stack, fused, in NCL (channel-on-sublane) layout.

    x_ref : (B, Cin0, L0)   input, PyTorch NCL layout, f32, VMEM
    w_ref : (ROWS, 128)     all conv taps packed row-wise, bf16 (pre-cast)
    g_ref : (GROWS, 2)      per-channel [gamma | beta] rows, f32
    o_ref : (B, CoutF, Lf)  output, NCL layout (no wrapper transpose needed)

    After layer 0 all activations are a single flat (C, B*seg) f32 block: batch b
    occupies columns [b*seg, b*seg + valid_len).  Because each layer only shrinks
    the valid length from lout to lout-(K-1), valid columns of layer l+1 read only
    valid columns of layer l, and the junk columns at the tail of each batch
    segment never contaminate valid data -- they are simply masked out of the
    BatchNorm statistics.
    """
    b_sz = x_ref.shape[0]
    mm_dtype = w_ref.dtype   # matmul operand dtype (bf16 by default)

    def conv_taps(meta, h_mm, width_out):
        """Valid Conv1d via K matmuls: sum_k W_k (Cout,Cin) @ h[:, k:k+width_out]."""
        cout, cin = meta["cout"], meta["cin"]
        acc = None
        for k, off in enumerate(meta["w_offs"]):
            w_tap = w_ref[off:off + cout, 0:cin]          # (Cout, Cin), bf16, static slice
            h_k = h_mm[:, k:k + width_out]                # (Cin, Wout)
            z = jnp.dot(w_tap, h_k, preferred_element_type=jnp.float32)
            acc = z if acc is None else acc + z           # accumulate in f32
        return acc                                        # (Cout, Wout) f32

    def bn_act(acc, meta, lout):
        """Training-mode BatchNorm1d (+ optional LeakyReLU) on the flat block."""
        cout = meta["cout"]
        wcols = acc.shape[1]
        goff = meta["g_off"]
        gamma = g_ref[goff:goff + cout, 0:1]              # (Cout, 1) f32
        beta = g_ref[goff:goff + cout, 1:2]               # (Cout, 1) f32

        # Valid-column mask: column j of the flat block is valid iff its position
        # within its batch segment (stride `seg`) is < lout.  Built from B static
        # range checks (no vector integer div/mod needed).
        col = jax.lax.broadcasted_iota(jnp.int32, (1, wcols), 1)
        mask = col < lout
        for b in range(1, b_sz):
            mask = mask | ((col >= b * seg) & (col < b * seg + lout))

        count = float(b_sz * lout)
        s = jnp.where(mask, acc, 0.0).sum(axis=1, keepdims=True)       # (Cout,1)
        mean = s * (1.0 / count)
        d = acc - mean
        ss = jnp.where(mask, d * d, 0.0).sum(axis=1, keepdims=True)    # biased var
        inv_std = jax.lax.rsqrt(ss * (1.0 / count) + _BN_EPS)

        scale = gamma * inv_std                                        # (Cout,1)
        shift = beta - mean * scale
        y = acc * scale + shift                                        # one broadcast/layer
        if meta["act"]:
            # LeakyReLU(slope=0.01): single VALU max instead of compare+select.
            y = jnp.maximum(y, _LEAKY_SLOPE * y)
        return y

    # ---- Layer 0: per-batch (input is NCL), then concatenate along lanes into the
    #      flat (Cout0, B*seg) block.  seg = L0 - (K-1).
    m0 = layers[0]
    parts = []
    for b in range(b_sz):
        xb = x_ref[b].astype(mm_dtype)                    # (Cin0, L0)
        parts.append(conv_taps(m0, xb, seg))              # (Cout0, seg) f32
    h = jnp.concatenate(parts, axis=1) if b_sz > 1 else parts[0]
    lout = seg
    h = bn_act(h, m0, lout)

    # ---- Layers 1..N-1: K matmuls per layer over the whole flat batch block.
    for m in layers[1:]:
        lout -= ksize - 1
        width_out = h.shape[1] - (ksize - 1)
        h_mm = h.astype(mm_dtype)                         # one cast per layer
        h = bn_act(conv_taps(m, h_mm, width_out), m, lout)

    # ---- Epilogue: write NCL output directly (no wrapper transpose).
    lf = lout
    for b in range(b_sz):
        o_ref[b, :, :] = h[:, b * seg:b * seg + lf].astype(o_ref.dtype)


# --------------------------------------------------------------------------- #
# Host-side parameter packing (one weight DMA + one gamma/beta DMA)
# --------------------------------------------------------------------------- #
def pack_gener_params(layers, kernel_size=3, matmul_dtype=_MATMUL_DTYPE):
    """Pack all conv taps into one (ROWS, 128) buffer (bf16) and all gamma/beta
    into one (GROWS, 2) f32 buffer.  Returns (wbuf, gbuf, static metadata)."""
    w_blocks, g_blocks, meta = [], [], []
    wrow = grow = 0
    for lyr in layers:
        w = jnp.asarray(lyr["w"], jnp.float32)            # PyTorch layout (Cout, Cin, K)
        cout, cin, ksz = w.shape
        assert ksz == kernel_size
        assert cin <= _LANE, "Cin > 128 would need lane tiling in the packed buffer"
        rpad = -(-cout // _WROW_ALIGN) * _WROW_ALIGN      # keep tap offsets tile-aligned
        offs = []
        for k in range(kernel_size):
            blk = jnp.zeros((rpad, _LANE), jnp.float32)
            blk = blk.at[:cout, :cin].set(w[:, :, k])     # tap k as (Cout, Cin)
            w_blocks.append(blk)
            offs.append(wrow)
            wrow += rpad
        gpad = -(-cout // _GROW_ALIGN) * _GROW_ALIGN
        gb = jnp.zeros((gpad, 2), jnp.float32)
        gb = gb.at[:cout, 0].set(lyr["gamma"]).at[:cout, 1].set(lyr["beta"])
        g_blocks.append(gb)
        meta.append(dict(cin=cin, cout=cout, w_offs=tuple(offs), g_off=grow,
                         act=bool(lyr["act"])))
        grow += gpad
    wbuf = jnp.concatenate(w_blocks, axis=0).astype(matmul_dtype)  # pre-cast bf16
    gbuf = jnp.concatenate(g_blocks, axis=0)                       # keep f32
    return wbuf, gbuf, tuple(meta)


# --------------------------------------------------------------------------- #
# pallas_call wrapper
# --------------------------------------------------------------------------- #
def _full_block(arr):
    """Full-array BlockSpec (block == array) for grid=(1,)."""
    nd = arr.ndim
    return pl.BlockSpec(arr.shape, lambda i, _nd=nd: (0,) * _nd)


def gener_conv1d_pallas(x_ncl, wbuf, gbuf, meta, *, kernel_size=3):
    """Run the fused stack.  x_ncl: (B, Cin0, L0) f32, PyTorch NCL layout."""
    B, _, L0 = x_ncl.shape
    n_layers = len(meta)
    seg = L0 - (kernel_size - 1)
    lf = L0 - n_layers * (kernel_size - 1)
    cout_f = meta[-1]["cout"]
    assert lf > 0, "input too short for the conv stack"

    # Advisory cost hint so XLA schedules neighbors around the custom call.
    flops = 0
    lout = L0
    for m in meta:
        lout -= kernel_size - 1
        flops += 2 * kernel_size * m["cin"] * m["cout"] * B * lout
    cost = pl.CostEstimate(
        flops=flops,
        transcendentals=sum(m["cout"] for m in meta),     # per-channel rsqrt
        bytes_accessed=(x_ncl.size * x_ncl.dtype.itemsize
                        + wbuf.size * wbuf.dtype.itemsize
                        + gbuf.size * gbuf.dtype.itemsize
                        + B * cout_f * lf * 4))

    kern = functools.partial(_fused_gener_kernel, layers=meta,
                             ksize=kernel_size, seg=seg)

    return pl.pallas_call(
        kern,
        out_shape=jax.ShapeDtypeStruct((B, cout_f, lf), jnp.float32),
        grid=(1,),
        in_specs=[_full_block(x_ncl), _full_block(wbuf), _full_block(gbuf)],
        out_specs=pl.BlockSpec((B, cout_f, lf), lambda i: (0, 0, 0)),
        compiler_params=pltpu.CompilerParams(
            dimension_semantics=("arbitrary",)),
        cost_estimate=cost,
    )(x_ncl, wbuf, gbuf)


def gener_conv1d_forward(x_ncl, layers, input_dim, *, kernel_size=3):
    """Forward pass matching GenerConv1d.forward.  x_ncl: (B, input_dim, L)."""
    assert x_ncl.ndim == 3 and x_ncl.shape[1] == input_dim, (
        f"inputs random noise must be in (Batch, Number, {input_dim})!.")
    wbuf, gbuf, meta = pack_gener_params(layers, kernel_size)
    # No layout transposes needed: kernel consumes and produces NCL directly.
    return gener_conv1d_pallas(x_ncl.astype(jnp.float32), wbuf, gbuf, meta,
                               kernel_size=kernel_size)


# --------------------------------------------------------------------------- #
# Parameter construction (matches GenerConv1d.__init__ shapes/inits)
# --------------------------------------------------------------------------- #
def build_gener_conv1d_params(key, input_dim, output_dim,
                              inter_ratio=(2.0, 128, -1.0), kernel_size=3):
    layer_dims = []
    old_dim = input_dim
    for ratio in inter_ratio:
        if isinstance(ratio, int) and ratio > 0:
            dim = ratio
        else:
            dim = int(ratio * input_dim if ratio > 0 else -1.0 * ratio * output_dim)
        layer_dims.append((old_dim, dim, True))            # Conv -> BN -> LeakyReLU
        old_dim = dim
    layer_dims.append((old_dim, output_dim, False))        # Conv -> BN -> Identity

    layers = []
    for (cin, cout, act) in layer_dims:
        key, kw = jax.random.split(key)
        bound = 1.0 / ((cin * kernel_size) ** 0.5)         # PyTorch Conv1d init
        w = jax.random.uniform(kw, (cout, cin, kernel_size),
                               minval=-bound, maxval=bound, dtype=jnp.float32)
        # Conv bias intentionally omitted: training-mode BatchNorm subtracts the
        # per-channel batch mean, which cancels a per-channel constant bias exactly.
        gamma = jnp.ones((cout,), jnp.float32)             # BN default init
        beta = jnp.zeros((cout,), jnp.float32)
        layers.append(dict(w=w, gamma=gamma, beta=beta, act=act))
    return layers


# --------------------------------------------------------------------------- #
# Pure-JAX reference (f32) for a loose-tolerance self check
# --------------------------------------------------------------------------- #
def _reference_forward(x_ncl, layers):
    h = x_ncl.astype(jnp.float32)                          # (B, C, L)
    for lyr in layers:
        w = lyr["w"]                                       # (Cout, Cin, K)
        K = w.shape[2]
        lout = h.shape[2] - K + 1
        acc = jnp.zeros((h.shape[0], w.shape[0], lout), jnp.float32)
        for k in range(K):
            acc = acc + jnp.einsum("oc,bcl->bol", w[:, :, k], h[:, :, k:k + lout])
        mean = acc.mean(axis=(0, 2), keepdims=True)
        var = ((acc - mean) ** 2).mean(axis=(0, 2), keepdims=True)     # biased
        y = (acc - mean) * jax.lax.rsqrt(var + _BN_EPS)
        y = y * lyr["gamma"][None, :, None] + lyr["beta"][None, :, None]
        if lyr["act"]:
            y = jnp.where(y >= 0, y, _LEAKY_SLOPE * y)
        h = y
    return h


if __name__ == "__main__":
    INPUT_DIM = 4
    OUTPUT_DIM = 8
    BATCH = 2
    LENGTH = 16     # 4 valid k=3 convs -> output length 16 - 8 = 8

    key = jax.random.PRNGKey(0)
    key, kx = jax.random.split(key)

    layers = build_gener_conv1d_params(key, INPUT_DIM, OUTPUT_DIM)
    x = jax.random.normal(kx, (BATCH, INPUT_DIM, LENGTH), dtype=jnp.float32)

    out = gener_conv1d_forward(x, layers, INPUT_DIM)
    out = jax.block_until_ready(out)

    expected_len = LENGTH - 2 * len(layers)
    assert out.shape == (BATCH, OUTPUT_DIM, expected_len), out.shape
    assert bool(jnp.all(jnp.isfinite(out)))

    # Loose-tolerance check vs the f32 reference: bf16 MXU inputs give ~1e-2-level
    # drift on the ~unit-scale (post-BN) outputs; structural bugs would be O(1).
    ref = _reference_forward(x, layers)
    max_err = float(jnp.max(jnp.abs(out - ref)))
    assert max_err < 0.15, f"kernel/reference mismatch: max abs err {max_err}"

    print("KERNEL_OK")
</pallas_src>

<mosaic_0001>
module attributes {stable_mosaic.version = 11 : i64} {
  func.func @_fused_gener_kernel(%arg0: i32, %arg1: memref<2x4x16xf32, #tpu.memory_space<vmem>>, %arg2: memref<528x128xbf16, #tpu.memory_space<vmem>>, %arg3: memref<152x2xf32, #tpu.memory_space<vmem>>, %arg4: memref<2x8x8xf32, #tpu.memory_space<vmem>>) attributes {dimension_semantics = [#tpu.dimension_semantics<arbitrary>], iteration_bounds = array<i64: 1>, scalar_prefetch = 0 : i64, scratch_operands = 0 : i64, tpu.core_type = #tpu.core_type<tc>, window_params = [{pipeline_mode = #tpu.pipeline_mode<synchronous>, transform_indices = @transform_0, window_bounds = array<i64: 2, 4, 16>}, {pipeline_mode = #tpu.pipeline_mode<synchronous>, transform_indices = @transform_1, window_bounds = array<i64: 528, 128>}, {pipeline_mode = #tpu.pipeline_mode<synchronous>, transform_indices = @transform_2, window_bounds = array<i64: 152, 2>}, {pipeline_mode = #tpu.pipeline_mode<synchronous>, transform_indices = @transform_3, window_bounds = array<i64: 2, 8, 8>}]} {
    %c0 = arith.constant 0 : index
    %c0_0 = arith.constant 0 : index
    %c0_1 = arith.constant 0 : index
    %0 = vector.load %arg1[%c0, %c0_0, %c0_1] : memref<2x4x16xf32, #tpu.memory_space<vmem>>, vector<1x4x16xf32>
    %1 = vector.shape_cast %0 : vector<1x4x16xf32> to vector<4x16xf32>
    %2 = arith.truncf %1 : vector<4x16xf32> to vector<4x16xbf16>
    %c0_2 = arith.constant 0 : index
    %c0_3 = arith.constant 0 : index
    %3 = vector.load %arg2[%c0_2, %c0_3] : memref<528x128xbf16, #tpu.memory_space<vmem>>, vector<8x4xbf16>
    %4 = vector.extract_strided_slice %2 {offsets = [0, 0], sizes = [4, 14], strides = [1, 1]} : vector<4x16xbf16> to vector<4x14xbf16>
    %cst = arith.constant dense<0.000000e+00> : vector<8x14xf32>
    %5 = tpu.matmul %3, %4, %cst {dimension_numbers = #tpu.dot_dimension_numbers<[1], [0], [0], [1], [0, 0, 1, 1], [], []>} : vector<8x4xbf16>, vector<4x14xbf16>, vector<8x14xf32> -> vector<8x14xf32>
    %c16 = arith.constant 16 : index
    %c0_4 = arith.constant 0 : index
    %6 = vector.load %arg2[%c16, %c0_4] : memref<528x128xbf16, #tpu.memory_space<vmem>>, vector<8x4xbf16>
    %7 = vector.extract_strided_slice %2 {offsets = [0, 1], sizes = [4, 14], strides = [1, 1]} : vector<4x16xbf16> to vector<4x14xbf16>
    %cst_5 = arith.constant dense<0.000000e+00> : vector<8x14xf32>
    %8 = tpu.matmul %6, %7, %cst_5 {dimension_numbers = #tpu.dot_dimension_numbers<[1], [0], [0], [1], [0, 0, 1, 1], [], []>} : vector<8x4xbf16>, vector<4x14xbf16>, vector<8x14xf32> -> vector<8x14xf32>
    %9 = arith.addf %5, %8 : vector<8x14xf32>
    %c32 = arith.constant 32 : index
    %c0_6 = arith.constant 0 : index
    %10 = vector.load %arg2[%c32, %c0_6] : memref<528x128xbf16, #tpu.memory_space<vmem>>, vector<8x4xbf16>
    %11 = vector.extract_strided_slice %2 {offsets = [0, 2], sizes = [4, 14], strides = [1, 1]} : vector<4x16xbf16> to vector<4x14xbf16>
    %cst_7 = arith.constant dense<0.000000e+00> : vector<8x14xf32>
    %12 = tpu.matmul %10, %11, %cst_7 {dimension_numbers = #tpu.dot_dimension_numbers<[1], [0], [0], [1], [0, 0, 1, 1], [], []>} : vector<8x4xbf16>, vector<4x14xbf16>, vector<8x14xf32> -> vector<8x14xf32>
    %13 = arith.addf %9, %12 : vector<8x14xf32>
    %c1 = arith.constant 1 : index
    %c0_8 = arith.constant 0 : index
    %c0_9 = arith.constant 0 : index
    %14 = vector.load %arg1[%c1, %c0_8, %c0_9] : memref<2x4x16xf32, #tpu.memory_space<vmem>>, vector<1x4x16xf32>
    %15 = vector.shape_cast %14 : vector<1x4x16xf32> to vector<4x16xf32>
    %16 = arith.truncf %15 : vector<4x16xf32> to vector<4x16xbf16>
    %c0_10 = arith.constant 0 : index
    %c0_11 = arith.constant 0 : index
    %17 = vector.load %arg2[%c0_10, %c0_11] : memref<528x128xbf16, #tpu.memory_space<vmem>>, vector<8x4xbf16>
    %18 = vector.extract_strided_slice %16 {offsets = [0, 0], sizes = [4, 14], strides = [1, 1]} : vector<4x16xbf16> to vector<4x14xbf16>
    %cst_12 = arith.constant dense<0.000000e+00> : vector<8x14xf32>
    %19 = tpu.matmul %17, %18, %cst_12 {dimension_numbers = #tpu.dot_dimension_numbers<[1], [0], [0], [1], [0, 0, 1, 1], [], []>} : vector<8x4xbf16>, vector<4x14xbf16>, vector<8x14xf32> -> vector<8x14xf32>
    %c16_13 = arith.constant 16 : index
    %c0_14 = arith.constant 0 : index
    %20 = vector.load %arg2[%c16_13, %c0_14] : memref<528x128xbf16, #tpu.memory_space<vmem>>, vector<8x4xbf16>
    %21 = vector.extract_strided_slice %16 {offsets = [0, 1], sizes = [4, 14], strides = [1, 1]} : vector<4x16xbf16> to vector<4x14xbf16>
    %cst_15 = arith.constant dense<0.000000e+00> : vector<8x14xf32>
    %22 = tpu.matmul %20, %21, %cst_15 {dimension_numbers = #tpu.dot_dimension_numbers<[1], [0], [0], [1], [0, 0, 1, 1], [], []>} : vector<8x4xbf16>, vector<4x14xbf16>, vector<8x14xf32> -> vector<8x14xf32>
    %23 = arith.addf %19, %22 : vector<8x14xf32>
    %c32_16 = arith.constant 32 : index
    %c0_17 = arith.constant 0 : index
    %24 = vector.load %arg2[%c32_16, %c0_17] : memref<528x128xbf16, #tpu.memory_space<vmem>>, vector<8x4xbf16>
    %25 = vector.extract_strided_slice %16 {offsets = [0, 2], sizes = [4, 14], strides = [1, 1]} : vector<4x16xbf16> to vector<4x14xbf16>
    %cst_18 = arith.constant dense<0.000000e+00> : vector<8x14xf32>
    %26 = tpu.matmul %24, %25, %cst_18 {dimension_numbers = #tpu.dot_dimension_numbers<[1], [0], [0], [1], [0, 0, 1, 1], [], []>} : vector<8x4xbf16>, vector<4x14xbf16>, vector<8x14xf32> -> vector<8x14xf32>
    %27 = arith.addf %23, %26 : vector<8x14xf32>
    %28 = tpu.concatenate %13, %27 in 1 : vector<8x14xf32>, vector<8x14xf32> -> vector<8x28xf32>
    %c0_19 = arith.constant 0 : index
    %c0_20 = arith.constant 0 : index
    %29 = vector.load %arg3[%c0_19, %c0_20] : memref<152x2xf32, #tpu.memory_space<vmem>>, vector<8x1xf32>
    %c0_21 = arith.constant 0 : index
    %c1_22 = arith.constant 1 : index
    %30 = vector.load %arg3[%c0_21, %c1_22] : memref<152x2xf32, #tpu.memory_space<vmem>>, vector<8x1xf32>
    %31 = tpu.iota {dimensions = array<i32: 1>} : vector<1x28xi32>
    %c14_i32 = arith.constant 14 : i32
    %32 = vector.broadcast %c14_i32 : i32 to vector<1x28xi32>
    %33 = arith.cmpi slt, %31, %32 : vector<1x28xi32>
    %c14_i32_23 = arith.constant 14 : i32
    %34 = vector.broadcast %c14_i32_23 : i32 to vector<1x28xi32>
    %35 = arith.cmpi sge, %31, %34 : vector<1x28xi32>
    %c28_i32 = arith.constant 28 : i32
    %36 = vector.broadcast %c28_i32 : i32 to vector<1x28xi32>
    %37 = arith.cmpi slt, %31, %36 : vector<1x28xi32>
    %38 = arith.andi %35, %37 : vector<1x28xi1>
    %39 = arith.ori %33, %38 : vector<1x28xi1>
    %cst_24 = arith.constant 0.000000e+00 : f32
    %40 = vector.shape_cast %39 : vector<1x28xi1> to vector<1x28xi1>
    %41 = vector.broadcast %40 : vector<1x28xi1> to vector<8x28xi1>
    %42 = vector.broadcast %cst_24 : f32 to vector<8x28xf32>
    %43 = arith.select %41, %28, %42 : vector<8x28xi1>, vector<8x28xf32>
    %cst_25 = arith.constant dense<0.000000e+00> : vector<8xf32>
    %44 = vector.multi_reduction <add>, %43, %cst_25 [1] : vector<8x28xf32> to vector<8xf32>
    %45 = vector.shape_cast %44 : vector<8xf32> to vector<8x1xf32>
    %cst_26 = arith.constant 0.0357142873 : f32
    %46 = vector.broadcast %cst_26 : f32 to vector<8x1xf32>
    %47 = arith.mulf %45, %46 : vector<8x1xf32>
    %48 = vector.broadcast %47 : vector<8x1xf32> to vector<8x28xf32>
    %49 = arith.subf %28, %48 : vector<8x28xf32>
    %50 = arith.mulf %49, %49 : vector<8x28xf32>
    %cst_27 = arith.constant 0.000000e+00 : f32
    %51 = vector.shape_cast %39 : vector<1x28xi1> to vector<1x28xi1>
    %52 = vector.broadcast %51 : vector<1x28xi1> to vector<8x28xi1>
    %53 = vector.broadcast %cst_27 : f32 to vector<8x28xf32>
    %54 = arith.select %52, %50, %53 : vector<8x28xi1>, vector<8x28xf32>
    %cst_28 = arith.constant dense<0.000000e+00> : vector<8xf32>
    %55 = vector.multi_reduction <add>, %54, %cst_28 [1] : vector<8x28xf32> to vector<8xf32>
    %56 = vector.shape_cast %55 : vector<8xf32> to vector<8x1xf32>
    %cst_29 = arith.constant 0.0357142873 : f32
    %57 = vector.broadcast %cst_29 : f32 to vector<8x1xf32>
    %58 = arith.mulf %56, %57 : vector<8x1xf32>
    %cst_30 = arith.constant 9.99999974E-6 : f32
    %59 = vector.broadcast %cst_30 : f32 to vector<8x1xf32>
    %60 = arith.addf %58, %59 : vector<8x1xf32>
    %61 = math.rsqrt %60 : vector<8x1xf32>
    %62 = arith.mulf %29, %61 : vector<8x1xf32>
    %63 = arith.mulf %47, %62 : vector<8x1xf32>
    %64 = arith.subf %30, %63 : vector<8x1xf32>
    %65 = vector.broadcast %62 : vector<8x1xf32> to vector<8x28xf32>
    %66 = arith.mulf %28, %65 : vector<8x28xf32>
    %67 = vector.broadcast %64 : vector<8x1xf32> to vector<8x28xf32>
    %68 = arith.addf %66, %67 : vector<8x28xf32>
    %cst_31 = arith.constant 0.00999999977 : f32
    %69 = vector.broadcast %cst_31 : f32 to vector<8x28xf32>
    %70 = arith.mulf %69, %68 : vector<8x28xf32>
    %71 = arith.maximumf %68, %70 : vector<8x28xf32>
    %72 = arith.truncf %71 : vector<8x28xf32> to vector<8x28xbf16>
    %c48 = arith.constant 48 : index
    %c0_32 = arith.constant 0 : index
    %73 = vector.load %arg2[%c48, %c0_32] : memref<528x128xbf16, #tpu.memory_space<vmem>>, vector<128x8xbf16>
    %74 = vector.extract_strided_slice %72 {offsets = [0, 0], sizes = [8, 26], strides = [1, 1]} : vector<8x28xbf16> to vector<8x26xbf16>
    %cst_33 = arith.constant dense<0.000000e+00> : vector<128x26xf32>
    %75 = tpu.matmul %73, %74, %cst_33 {dimension_numbers = #tpu.dot_dimension_numbers<[1], [0], [0], [1], [0, 0, 1, 1], [], []>} : vector<128x8xbf16>, vector<8x26xbf16>, vector<128x26xf32> -> vector<128x26xf32>
    %c176 = arith.constant 176 : index
    %c0_34 = arith.constant 0 : index
    %76 = vector.load %arg2[%c176, %c0_34] : memref<528x128xbf16, #tpu.memory_space<vmem>>, vector<128x8xbf16>
    %77 = vector.extract_strided_slice %72 {offsets = [0, 1], sizes = [8, 26], strides = [1, 1]} : vector<8x28xbf16> to vector<8x26xbf16>
    %cst_35 = arith.constant dense<0.000000e+00> : vector<128x26xf32>
    %78 = tpu.matmul %76, %77, %cst_35 {dimension_numbers = #tpu.dot_dimension_numbers<[1], [0], [0], [1], [0, 0, 1, 1], [], []>} : vector<128x8xbf16>, vector<8x26xbf16>, vector<128x26xf32> -> vector<128x26xf32>
    %79 = arith.addf %75, %78 : vector<128x26xf32>
    %c304 = arith.constant 304 : index
    %c0_36 = arith.constant 0 : index
    %80 = vector.load %arg2[%c304, %c0_36] : memref<528x128xbf16, #tpu.memory_space<vmem>>, vector<128x8xbf16>
    %81 = vector.extract_strided_slice %72 {offsets = [0, 2], sizes = [8, 26], strides = [1, 1]} : vector<8x28xbf16> to vector<8x26xbf16>
    %cst_37 = arith.constant dense<0.000000e+00> : vector<128x26xf32>
    %82 = tpu.matmul %80, %81, %cst_37 {dimension_numbers = #tpu.dot_dimension_numbers<[1], [0], [0], [1], [0, 0, 1, 1], [], []>} : vector<128x8xbf16>, vector<8x26xbf16>, vector<128x26xf32> -> vector<128x26xf32>
    %83 = arith.addf %79, %82 : vector<128x26xf32>
    %c8 = arith.constant 8 : index
    %c0_38 = arith.constant 0 : index
    %84 = vector.load %arg3[%c8, %c0_38] : memref<152x2xf32, #tpu.memory_space<vmem>>, vector<128x1xf32>
    %c8_39 = arith.constant 8 : index
    %c1_40 = arith.constant 1 : index
    %85 = vector.load %arg3[%c8_39, %c1_40] : memref<152x2xf32, #tpu.memory_space<vmem>>, vector<128x1xf32>
    %86 = tpu.iota {dimensions = array<i32: 1>} : vector<1x26xi32>
    %c12_i32 = arith.constant 12 : i32
    %87 = vector.broadcast %c12_i32 : i32 to vector<1x26xi32>
    %88 = arith.cmpi slt, %86, %87 : vector<1x26xi32>
    %c14_i32_41 = arith.constant 14 : i32
    %89 = vector.broadcast %c14_i32_41 : i32 to vector<1x26xi32>
    %90 = arith.cmpi sge, %86, %89 : vector<1x26xi32>
    %c26_i32 = arith.constant 26 : i32
    %91 = vector.broadcast %c26_i32 : i32 to vector<1x26xi32>
    %92 = arith.cmpi slt, %86, %91 : vector<1x26xi32>
    %93 = arith.andi %90, %92 : vector<1x26xi1>
    %94 = arith.ori %88, %93 : vector<1x26xi1>
    %cst_42 = arith.constant 0.000000e+00 : f32
    %95 = vector.shape_cast %94 : vector<1x26xi1> to vector<1x26xi1>
    %96 = vector.broadcast %95 : vector<1x26xi1> to vector<128x26xi1>
    %97 = vector.broadcast %cst_42 : f32 to vector<128x26xf32>
    %98 = arith.select %96, %83, %97 : vector<128x26xi1>, vector<128x26xf32>
    %cst_43 = arith.constant dense<0.000000e+00> : vector<128xf32>
    %99 = vector.multi_reduction <add>, %98, %cst_43 [1] : vector<128x26xf32> to vector<128xf32>
    %100 = vector.shape_cast %99 : vector<128xf32> to vector<128x1xf32>
    %cst_44 = arith.constant 0.0416666679 : f32
    %101 = vector.broadcast %cst_44 : f32 to vector<128x1xf32>
    %102 = arith.mulf %100, %101 : vector<128x1xf32>
    %103 = vector.broadcast %102 : vector<128x1xf32> to vector<128x26xf32>
    %104 = arith.subf %83, %103 : vector<128x26xf32>
    %105 = arith.mulf %104, %104 : vector<128x26xf32>
    %cst_45 = arith.constant 0.000000e+00 : f32
    %106 = vector.shape_cast %94 : vector<1x26xi1> to vector<1x26xi1>
    %107 = vector.broadcast %106 : vector<1x26xi1> to vector<128x26xi1>
    %108 = vector.broadcast %cst_45 : f32 to vector<128x26xf32>
    %109 = arith.select %107, %105, %108 : vector<128x26xi1>, vector<128x26xf32>
    %cst_46 = arith.constant dense<0.000000e+00> : vector<128xf32>
    %110 = vector.multi_reduction <add>, %109, %cst_46 [1] : vector<128x26xf32> to vector<128xf32>
    %111 = vector.shape_cast %110 : vector<128xf32> to vector<128x1xf32>
    %cst_47 = arith.constant 0.0416666679 : f32
    %112 = vector.broadcast %cst_47 : f32 to vector<128x1xf32>
    %113 = arith.mulf %111, %112 : vector<128x1xf32>
    %cst_48 = arith.constant 9.99999974E-6 : f32
    %114 = vector.broadcast %cst_48 : f32 to vector<128x1xf32>
    %115 = arith.addf %113, %114 : vector<128x1xf32>
    %116 = math.rsqrt %115 : vector<128x1xf32>
    %117 = arith.mulf %84, %116 : vector<128x1xf32>
    %118 = arith.mulf %102, %117 : vector<128x1xf32>
    %119 = arith.subf %85, %118 : vector<128x1xf32>
    %120 = vector.broadcast %117 : vector<128x1xf32> to vector<128x26xf32>
    %121 = arith.mulf %83, %120 : vector<128x26xf32>
    %122 = vector.broadcast %119 : vector<128x1xf32> to vector<128x26xf32>
    %123 = arith.addf %121, %122 : vector<128x26xf32>
    %cst_49 = arith.constant 0.00999999977 : f32
    %124 = vector.broadcast %cst_49 : f32 to vector<128x26xf32>
    %125 = arith.mulf %124, %123 : vector<128x26xf32>
    %126 = arith.maximumf %123, %125 : vector<128x26xf32>
    %127 = arith.truncf %126 : vector<128x26xf32> to vector<128x26xbf16>
    %c432 = arith.constant 432 : index
    %c0_50 = arith.constant 0 : index
    %128 = vector.load %arg2[%c432, %c0_50] : memref<528x128xbf16, #tpu.memory_space<vmem>>, vector<8x128xbf16>
    %129 = vector.extract_strided_slice %127 {offsets = [0, 0], sizes = [128, 24], strides = [1, 1]} : vector<128x26xbf16> to vector<128x24xbf16>
    %cst_51 = arith.constant dense<0.000000e+00> : vector<8x24xf32>
    %130 = tpu.matmul %128, %129, %cst_51 {dimension_numbers = #tpu.dot_dimension_numbers<[1], [0], [0], [1], [0, 0, 1, 1], [], []>} : vector<8x128xbf16>, vector<128x24xbf16>, vector<8x24xf32> -> vector<8x24xf32>
    %c448 = arith.constant 448 : index
    %c0_52 = arith.constant 0 : index
    %131 = vector.load %arg2[%c448, %c0_52] : memref<528x128xbf16, #tpu.memory_space<vmem>>, vector<8x128xbf16>
    %132 = vector.extract_strided_slice %127 {offsets = [0, 1], sizes = [128, 24], strides = [1, 1]} : vector<128x26xbf16> to vector<128x24xbf16>
    %cst_53 = arith.constant dense<0.000000e+00> : vector<8x24xf32>
    %133 = tpu.matmul %131, %132, %cst_53 {dimension_numbers = #tpu.dot_dimension_numbers<[1], [0], [0], [1], [0, 0, 1, 1], [], []>} : vector<8x128xbf16>, vector<128x24xbf16>, vector<8x24xf32> -> vector<8x24xf32>
    %134 = arith.addf %130, %133 : vector<8x24xf32>
    %c464 = arith.constant 464 : index
    %c0_54 = arith.constant 0 : index
    %135 = vector.load %arg2[%c464, %c0_54] : memref<528x128xbf16, #tpu.memory_space<vmem>>, vector<8x128xbf16>
    %136 = vector.extract_strided_slice %127 {offsets = [0, 2], sizes = [128, 24], strides = [1, 1]} : vector<128x26xbf16> to vector<128x24xbf16>
    %cst_55 = arith.constant dense<0.000000e+00> : vector<8x24xf32>
    %137 = tpu.matmul %135, %136, %cst_55 {dimension_numbers = #tpu.dot_dimension_numbers<[1], [0], [0], [1], [0, 0, 1, 1], [], []>} : vector<8x128xbf16>, vector<128x24xbf16>, vector<8x24xf32> -> vector<8x24xf32>
    %138 = arith.addf %134, %137 : vector<8x24xf32>
    %c136 = arith.constant 136 : index
    %c0_56 = arith.constant 0 : index
    %139 = vector.load %arg3[%c136, %c0_56] : memref<152x2xf32, #tpu.memory_space<vmem>>, vector<8x1xf32>
    %c136_57 = arith.constant 136 : index
    %c1_58 = arith.constant 1 : index
    %140 = vector.load %arg3[%c136_57, %c1_58] : memref<152x2xf32, #tpu.memory_space<vmem>>, vector<8x1xf32>
    %141 = tpu.iota {dimensions = array<i32: 1>} : vector<1x24xi32>
    %c10_i32 = arith.constant 10 : i32
    %142 = vector.broadcast %c10_i32 : i32 to vector<1x24xi32>
    %143 = arith.cmpi slt, %141, %142 : vector<1x24xi32>
    %c14_i32_59 = arith.constant 14 : i32
    %144 = vector.broadcast %c14_i32_59 : i32 to vector<1x24xi32>
    %145 = arith.cmpi sge, %141, %144 : vector<1x24xi32>
    %c24_i32 = arith.constant 24 : i32
    %146 = vector.broadcast %c24_i32 : i32 to vector<1x24xi32>
    %147 = arith.cmpi slt, %141, %146 : vector<1x24xi32>
    %148 = arith.andi %145, %147 : vector<1x24xi1>
    %149 = arith.ori %143, %148 : vector<1x24xi1>
    %cst_60 = arith.constant 0.000000e+00 : f32
    %150 = vector.shape_cast %149 : vector<1x24xi1> to vector<1x24xi1>
    %151 = vector.broadcast %150 : vector<1x24xi1> to vector<8x24xi1>
    %152 = vector.broadcast %cst_60 : f32 to vector<8x24xf32>
    %153 = arith.select %151, %138, %152 : vector<8x24xi1>, vector<8x24xf32>
    %cst_61 = arith.constant dense<0.000000e+00> : vector<8xf32>
    %154 = vector.multi_reduction <add>, %153, %cst_61 [1] : vector<8x24xf32> to vector<8xf32>
    %155 = vector.shape_cast %154 : vector<8xf32> to vector<8x1xf32>
    %cst_62 = arith.constant 5.000000e-02 : f32
    %156 = vector.broadcast %cst_62 : f32 to vector<8x1xf32>
    %157 = arith.mulf %155, %156 : vector<8x1xf32>
    %158 = vector.broadcast %157 : vector<8x1xf32> to vector<8x24xf32>
    %159 = arith.subf %138, %158 : vector<8x24xf32>
    %160 = arith.mulf %159, %159 : vector<8x24xf32>
    %cst_63 = arith.constant 0.000000e+00 : f32
    %161 = vector.shape_cast %149 : vector<1x24xi1> to vector<1x24xi1>
    %162 = vector.broadcast %161 : vector<1x24xi1> to vector<8x24xi1>
    %163 = vector.broadcast %cst_63 : f32 to vector<8x24xf32>
    %164 = arith.select %162, %160, %163 : vector<8x24xi1>, vector<8x24xf32>
    %cst_64 = arith.constant dense<0.000000e+00> : vector<8xf32>
    %165 = vector.multi_reduction <add>, %164, %cst_64 [1] : vector<8x24xf32> to vector<8xf32>
    %166 = vector.shape_cast %165 : vector<8xf32> to vector<8x1xf32>
    %cst_65 = arith.constant 5.000000e-02 : f32
    %167 = vector.broadcast %cst_65 : f32 to vector<8x1xf32>
    %168 = arith.mulf %166, %167 : vector<8x1xf32>
    %cst_66 = arith.constant 9.99999974E-6 : f32
    %169 = vector.broadcast %cst_66 : f32 to vector<8x1xf32>
    %170 = arith.addf %168, %169 : vector<8x1xf32>
    %171 = math.rsqrt %170 : vector<8x1xf32>
    %172 = arith.mulf %139, %171 : vector<8x1xf32>
    %173 = arith.mulf %157, %172 : vector<8x1xf32>
    %174 = arith.subf %140, %173 : vector<8x1xf32>
    %175 = vector.broadcast %172 : vector<8x1xf32> to vector<8x24xf32>
    %176 = arith.mulf %138, %175 : vector<8x24xf32>
    %177 = vector.broadcast %174 : vector<8x1xf32> to vector<8x24xf32>
    %178 = arith.addf %176, %177 : vector<8x24xf32>
    %cst_67 = arith.constant 0.00999999977 : f32
    %179 = vector.broadcast %cst_67 : f32 to vector<8x24xf32>
    %180 = arith.mulf %179, %178 : vector<8x24xf32>
    %181 = arith.maximumf %178, %180 : vector<8x24xf32>
    %182 = arith.truncf %181 : vector<8x24xf32> to vector<8x24xbf16>
    %c480 = arith.constant 480 : index
    %c0_68 = arith.constant 0 : index
    %183 = vector.load %arg2[%c480, %c0_68] : memref<528x128xbf16, #tpu.memory_space<vmem>>, vector<8x8xbf16>
    %184 = vector.extract_strided_slice %182 {offsets = [0, 0], sizes = [8, 22], strides = [1, 1]} : vector<8x24xbf16> to vector<8x22xbf16>
    %cst_69 = arith.constant dense<0.000000e+00> : vector<8x22xf32>
    %185 = tpu.matmul %183, %184, %cst_69 {dimension_numbers = #tpu.dot_dimension_numbers<[1], [0], [0], [1], [0, 0, 1, 1], [], []>} : vector<8x8xbf16>, vector<8x22xbf16>, vector<8x22xf32> -> vector<8x22xf32>
    %c496 = arith.constant 496 : index
    %c0_70 = arith.constant 0 : index
    %186 = vector.load %arg2[%c496, %c0_70] : memref<528x128xbf16, #tpu.memory_space<vmem>>, vector<8x8xbf16>
    %187 = vector.extract_strided_slice %182 {offsets = [0, 1], sizes = [8, 22], strides = [1, 1]} : vector<8x24xbf16> to vector<8x22xbf16>
    %cst_71 = arith.constant dense<0.000000e+00> : vector<8x22xf32>
    %188 = tpu.matmul %186, %187, %cst_71 {dimension_numbers = #tpu.dot_dimension_numbers<[1], [0], [0], [1], [0, 0, 1, 1], [], []>} : vector<8x8xbf16>, vector<8x22xbf16>, vector<8x22xf32> -> vector<8x22xf32>
    %189 = arith.addf %185, %188 : vector<8x22xf32>
    %c512 = arith.constant 512 : index
    %c0_72 = arith.constant 0 : index
    %190 = vector.load %arg2[%c512, %c0_72] : memref<528x128xbf16, #tpu.memory_space<vmem>>, vector<8x8xbf16>
    %191 = vector.extract_strided_slice %182 {offsets = [0, 2], sizes = [8, 22], strides = [1, 1]} : vector<8x24xbf16> to vector<8x22xbf16>
    %cst_73 = arith.constant dense<0.000000e+00> : vector<8x22xf32>
    %192 = tpu.matmul %190, %191, %cst_73 {dimension_numbers = #tpu.dot_dimension_numbers<[1], [0], [0], [1], [0, 0, 1, 1], [], []>} : vector<8x8xbf16>, vector<8x22xbf16>, vector<8x22xf32> -> vector<8x22xf32>
    %193 = arith.addf %189, %192 : vector<8x22xf32>
    %c144 = arith.constant 144 : index
    %c0_74 = arith.constant 0 : index
    %194 = vector.load %arg3[%c144, %c0_74] : memref<152x2xf32, #tpu.memory_space<vmem>>, vector<8x1xf32>
    %c144_75 = arith.constant 144 : index
    %c1_76 = arith.constant 1 : index
    %195 = vector.load %arg3[%c144_75, %c1_76] : memref<152x2xf32, #tpu.memory_space<vmem>>, vector<8x1xf32>
    %196 = tpu.iota {dimensions = array<i32: 1>} : vector<1x22xi32>
    %c8_i32 = arith.constant 8 : i32
    %197 = vector.broadcast %c8_i32 : i32 to vector<1x22xi32>
    %198 = arith.cmpi slt, %196, %197 : vector<1x22xi32>
    %c14_i32_77 = arith.constant 14 : i32
    %199 = vector.broadcast %c14_i32_77 : i32 to vector<1x22xi32>
    %200 = arith.cmpi sge, %196, %199 : vector<1x22xi32>
    %c22_i32 = arith.constant 22 : i32
    %201 = vector.broadcast %c22_i32 : i32 to vector<1x22xi32>
    %202 = arith.cmpi slt, %196, %201 : vector<1x22xi32>
    %203 = arith.andi %200, %202 : vector<1x22xi1>
    %204 = arith.ori %198, %203 : vector<1x22xi1>
    %cst_78 = arith.constant 0.000000e+00 : f32
    %205 = vector.shape_cast %204 : vector<1x22xi1> to vector<1x22xi1>
    %206 = vector.broadcast %205 : vector<1x22xi1> to vector<8x22xi1>
    %207 = vector.broadcast %cst_78 : f32 to vector<8x22xf32>
    %208 = arith.select %206, %193, %207 : vector<8x22xi1>, vector<8x22xf32>
    %cst_79 = arith.constant dense<0.000000e+00> : vector<8xf32>
    %209 = vector.multi_reduction <add>, %208, %cst_79 [1] : vector<8x22xf32> to vector<8xf32>
    %210 = vector.shape_cast %209 : vector<8xf32> to vector<8x1xf32>
    %cst_80 = arith.constant 6.250000e-02 : f32
    %211 = vector.broadcast %cst_80 : f32 to vector<8x1xf32>
    %212 = arith.mulf %210, %211 : vector<8x1xf32>
    %213 = vector.broadcast %212 : vector<8x1xf32> to vector<8x22xf32>
    %214 = arith.subf %193, %213 : vector<8x22xf32>
    %215 = arith.mulf %214, %214 : vector<8x22xf32>
    %cst_81 = arith.constant 0.000000e+00 : f32
    %216 = vector.shape_cast %204 : vector<1x22xi1> to vector<1x22xi1>
    %217 = vector.broadcast %216 : vector<1x22xi1> to vector<8x22xi1>
    %218 = vector.broadcast %cst_81 : f32 to vector<8x22xf32>
    %219 = arith.select %217, %215, %218 : vector<8x22xi1>, vector<8x22xf32>
    %cst_82 = arith.constant dense<0.000000e+00> : vector<8xf32>
    %220 = vector.multi_reduction <add>, %219, %cst_82 [1] : vector<8x22xf32> to vector<8xf32>
    %221 = vector.shape_cast %220 : vector<8xf32> to vector<8x1xf32>
    %cst_83 = arith.constant 6.250000e-02 : f32
    %222 = vector.broadcast %cst_83 : f32 to vector<8x1xf32>
    %223 = arith.mulf %221, %222 : vector<8x1xf32>
    %cst_84 = arith.constant 9.99999974E-6 : f32
    %224 = vector.broadcast %cst_84 : f32 to vector<8x1xf32>
    %225 = arith.addf %223, %224 : vector<8x1xf32>
    %226 = math.rsqrt %225 : vector<8x1xf32>
    %227 = arith.mulf %194, %226 : vector<8x1xf32>
    %228 = arith.mulf %212, %227 : vector<8x1xf32>
    %229 = arith.subf %195, %228 : vector<8x1xf32>
    %230 = vector.broadcast %227 : vector<8x1xf32> to vector<8x22xf32>
    %231 = arith.mulf %193, %230 : vector<8x22xf32>
    %232 = vector.broadcast %229 : vector<8x1xf32> to vector<8x22xf32>
    %233 = arith.addf %231, %232 : vector<8x22xf32>
    %234 = vector.extract_strided_slice %233 {offsets = [0, 0], sizes = [8, 8], strides = [1, 1]} : vector<8x22xf32> to vector<8x8xf32>
    %c0_85 = arith.constant 0 : index
    %c0_86 = arith.constant 0 : index
    %c0_87 = arith.constant 0 : index
    %235 = vector.load %arg4[%c0_85, %c0_86, %c0_87] : memref<2x8x8xf32, #tpu.memory_space<vmem>>, vector<1x8x8xf32>
    %236 = vector.shape_cast %235 : vector<1x8x8xf32> to vector<8x8xf32>
    %237 = vector.shape_cast %234 : vector<8x8xf32> to vector<1x8x8xf32>
    tpu.vector_store %arg4[%c0_85, %c0_86, %c0_87], %237 {strides = array<i32>} : memref<2x8x8xf32, #tpu.memory_space<vmem>>, vector<1x8x8xf32>,
    %238 = vector.extract_strided_slice %233 {offsets = [0, 14], sizes = [8, 8], strides = [1, 1]} : vector<8x22xf32> to vector<8x8xf32>
    %c1_88 = arith.constant 1 : index
    %c0_89 = arith.constant 0 : index
    %c0_90 = arith.constant 0 : index
    %239 = vector.load %arg4[%c1_88, %c0_89, %c0_90] : memref<2x8x8xf32, #tpu.memory_space<vmem>>, vector<1x8x8xf32>
    %240 = vector.shape_cast %239 : vector<1x8x8xf32> to vector<8x8xf32>
    %241 = vector.shape_cast %238 : vector<8x8xf32> to vector<1x8x8xf32>
    tpu.vector_store %arg4[%c1_88, %c0_89, %c0_90], %241 {strides = array<i32>} : memref<2x8x8xf32, #tpu.memory_space<vmem>>, vector<1x8x8xf32>,
    return
  }
  func.func @transform_0(%arg0: i32) -> (i32, i32, i32) {
    %c0_i32 = arith.constant 0 : i32
    %c0_i32_0 = arith.constant 0 : i32
    %c0_i32_1 = arith.constant 0 : i32
    %c0_i32_2 = arith.constant 0 : i32
    return %c0_i32, %c0_i32_0, %c0_i32_1 : i32, i32, i32
  }
  func.func @transform_1(%arg0: i32) -> (i32, i32) {
    %c0_i32 = arith.constant 0 : i32
    %c0_i32_0 = arith.constant 0 : i32
    %c0_i32_1 = arith.constant 0 : i32
    return %c0_i32, %c0_i32_0 : i32, i32
  }
  func.func @transform_2(%arg0: i32) -> (i32, i32) {
    %c0_i32 = arith.constant 0 : i32
    %c0_i32_0 = arith.constant 0 : i32
    %c0_i32_1 = arith.constant 0 : i32
    return %c0_i32, %c0_i32_0 : i32, i32
  }
  func.func @transform_3(%arg0: i32) -> (i32, i32, i32) {
    %c0_i32 = arith.constant 0 : i32
    %c0_i32_0 = arith.constant 0 : i32
    %c0_i32_1 = arith.constant 0 : i32
    %c0_i32_2 = arith.constant 0 : i32
    return %c0_i32, %c0_i32_0, %c0_i32_1 : i32, i32, i32
  }
}

</mosaic_0001>

<llo_original>
// kernel: tpu_custom_call.1
$region0: #{tpu_custom_call.1}
  #allocation0 [shape = 'u32[]', space=smem, size = 0x4, offset = 0x4, fixed_abs, tag = 'smem constant byte address 0x4 - core index']
  #allocation1 [shape = 'u32[144,128]{1,0:T(1,128)}', space=vmem, size = 0x12000, scoped, tag = 'internal scratch']
  %s0 = inlined_call_operand.vmem [shape: f32[2,4,16], index: 0, kind: input, shape index: {}]
  %s1 = inlined_call_operand.hbm [shape: bf16[528,128], index: 1, kind: input, shape index: {}]
  %s2 = inlined_call_operand.vmem [shape: f32[152,2], index: 2, kind: input, shape index: {}]
  %s3 = inlined_call_operand.hbm [shape: f32[2,8,8], index: 3, kind: output, shape index: {}]
  %s4 = sld [smem:[#allocation0]]
  $region26: #{tpu_custom_call.1} parent=0
    _
  %s6 = ssub.s32 1, %s4
  %s7 = scalar_select 0, %s6, %s4
  $region1: #{tpu_custom_call.1} parent=0
    #allocation2 [shape = 'u8[135168]{0}', space=vmem, size = 0x21000, scoped, tag = 'input window, operand 1, single buffered']
    #allocation3 [shape = 's32[1]{0}', space=sflag, size = 0x4, scoped, tag = 'scoped memory for tpu_custom_call.1']
    #allocation4 [shape = 's32[1]{0}', space=sflag, size = 0x4, scoped, tag = 'scoped memory for tpu_custom_call.1']
    #allocation5 [shape = 'u8[8192]{0}', space=vmem, size = 0x2000, scoped, tag = 'output window, operand 0, single buffered']
    %8 = vsyncpa [#allocation3], 0
    %9 = vsyncpa [#allocation4], 0
    // Predicated region
    $region2: #{tpu_custom_call.1} parent=1 // pred_check
      _
    $region3: #{tpu_custom_call.1} parent=1 // pred_check_branch
      %11 = sbr.rel (0) target = $region5
    $region4: #{tpu_custom_call.1} parent=1 // pred_region
      _
    $region5: #{tpu_custom_call.1} parent=1 // pred_fallthru
      _
    // Predicated region
    $region6: #{tpu_custom_call.1} parent=1 // pred_check
      _
    $region7: #{tpu_custom_call.1} parent=1 // pred_check_branch
      %13 = sbr.rel (0) target = $region9
    $region8: #{tpu_custom_call.1} parent=1 // pred_region
      %s15 = ssub.s32 4224, 4224
      %16 = vsyncadd [#allocation3], %s15
      %s17 = sshll.u32 [#allocation2], 4
      %s18 = int_to_ptr.vmem [resolvable:$true] %s17
      %23 = dma.hbm_to_vmem [thread:$0]  %s1, 4224, %s18, [#allocation3], 64, 64, 4
    $region9: #{tpu_custom_call.1} parent=1 // pred_fallthru
      _
    // Predicated region
    $region10: #{tpu_custom_call.1} parent=1 // pred_check
      _
    $region11: #{tpu_custom_call.1} parent=1 // pred_check_branch
      %25 = sbr.rel (0) target = $region13
    $region12: #{tpu_custom_call.1} parent=1 // pred_region
      _
    $region13: #{tpu_custom_call.1} parent=1 // pred_fallthru
      _
    // Predicated region
    $region14: #{tpu_custom_call.1} parent=1 // pred_check
      _
    $region15: #{tpu_custom_call.1} parent=1 // pred_check_branch
      %27 = sbr.rel (0) target = $region17
    $region16: #{tpu_custom_call.1} parent=1 // pred_region
      %28 = dma.done [#allocation3], 4224
    $region17: #{tpu_custom_call.1} parent=1 // pred_fallthru
      _
    %v30 = vld [vmem:[%s0] sm:$0xf]
    %v31 = vpack.c.bf16 %v30, %v30
    %v32 = vld [vmem:[#allocation2] sm:$0xf]
    %v33 = vld [vmem:[#allocation2 + $0x8] sm:$0xf]
    %35 = vrot.lane.b32.xlu0 %v31, 127
    %v36 = vpop.permute.xlu0 %35
    %vm37 = vcmask 31744
    %v39 = vsel %vm37, %v33, 0
    %vm41 = vcmask 1041408
    %v43 = vsel %vm41, %v36, 0
    %45 = vmatprep.subr.bf16.mxu0 0
    %46 = vmatpush1.bf16.msra.mxu0 0
    %47 = vmatprep.subr.bf16.mxu0 0
    %48 = vmatpush1.bf16.msra.mxu0 0
    %49 = vmatprep.subr.bf16.mxu0 0
    %50 = vmatpush1.bf16.msra.mxu0 0
    %51 = vmatprep.subr.bf16.mxu0 0
    %52 = vmatpush1.bf16.msra.mxu0 0
    %53 = vmatprep.subr.bf16.mxu0 0
    %54 = vmatpush1.bf16.msra.mxu0 0
    %55 = vmatprep.subr.bf16.mxu0 0
    %56 = vmatpush1.bf16.msra.mxu0 0
    %57 = vmatprep.subr.bf16.mxu0 0
    %58 = vmatpush1.bf16.msra.mxu0 0
    %59 = vmatprep.subr.bf16.mxu0 0
    %60 = vmatpush1.bf16.msra.mxu0 %v43
    %61 = vmatprep.subr.bf16.mxu0 0
    %62 = vmatpush2.bf16.msra.mxu0 0
    %63 = vmatprep.subr.bf16.mxu0 0
    %64 = vmatpush2.bf16.msra.mxu0 0
    %65 = vmatprep.subr.bf16.mxu0 0
    %66 = vmatpush2.bf16.msra.mxu0 0
    %67 = vmatprep.subr.bf16.mxu0 0
    %68 = vmatpush2.bf16.msra.mxu0 0
    %69 = vmatprep.subr.bf16.mxu0 0
    %70 = vmatpush2.bf16.msra.mxu0 0
    %71 = vmatprep.subr.bf16.mxu0 0
    %72 = vmatpush2.bf16.msra.mxu0 0
    %73 = vmatprep.subr.bf16.mxu0 0
    %74 = vmatpush2.bf16.msra.mxu0 0
    %75 = vmatprep.subr.bf16.mxu0 0
    %76 = vmatpush2.bf16.msra.mxu0 0
    %77 = vmatprep.mubr.bf16.mxu0 0
    %78 = vmatmul.mubr.bf16.gmra.mxu0 %v39
    %v79 = vpop.f32.mrf.mxu0
    %v80 = vadd.f32 0.0, %v79
    %v81 = vpop.f32.mrf.mxu0
    %v82 = vpop.f32.mrf.mxu0
    %v83 = vpop.f32.mrf.mxu0
    %84 = vdwg.mxu0
    %v86 = vsel %vm37, %v32, 0
    %v89 = vsel %vm41, %v31, 0
    %91 = vmatprep.subr.bf16.mxu0 0
    %92 = vmatpush1.bf16.msra.mxu0 0
    %93 = vmatprep.subr.bf16.mxu0 0
    %94 = vmatpush1.bf16.msra.mxu0 0
    %95 = vmatprep.subr.bf16.mxu0 0
    %96 = vmatpush1.bf16.msra.mxu0 0
    %97 = vmatprep.subr.bf16.mxu0 0
    %98 = vmatpush1.bf16.msra.mxu0 0
    %99 = vmatprep.subr.bf16.mxu0 0
    %100 = vmatpush1.bf16.msra.mxu0 0
    %101 = vmatprep.subr.bf16.mxu0 0
    %102 = vmatpush1.bf16.msra.mxu0 0
    %103 = vmatprep.subr.bf16.mxu0 0
    %104 = vmatpush1.bf16.msra.mxu0 0
    %105 = vmatprep.subr.bf16.mxu0 0
    %106 = vmatpush1.bf16.msra.mxu0 %v89
    %107 = vmatprep.subr.bf16.mxu0 0
    %108 = vmatpush2.bf16.msra.mxu0 0
    %109 = vmatprep.subr.bf16.mxu0 0
    %110 = vmatpush2.bf16.msra.mxu0 0
    %111 = vmatprep.subr.bf16.mxu0 0
    %112 = vmatpush2.bf16.msra.mxu0 0
    %113 = vmatprep.subr.bf16.mxu0 0
    %114 = vmatpush2.bf16.msra.mxu0 0
    %115 = vmatprep.subr.bf16.mxu0 0
    %116 = vmatpush2.bf16.msra.mxu0 0
    %117 = vmatprep.subr.bf16.mxu0 0
    %118 = vmatpush2.bf16.msra.mxu0 0
    %119 = vmatprep.subr.bf16.mxu0 0
    %120 = vmatpush2.bf16.msra.mxu0 0
    %121 = vmatprep.subr.bf16.mxu0 0
    %122 = vmatpush2.bf16.msra.mxu0 0
    %123 = vmatprep.mubr.bf16.mxu0 0
    %124 = vmatmul.mubr.bf16.gmra.mxu0 %v86
    %v125 = vpop.f32.mrf.mxu0
    %v126 = vadd.f32 %v80, %v125
    %v127 = vpop.f32.mrf.mxu0
    %v128 = vpop.f32.mrf.mxu0
    %v129 = vpop.f32.mrf.mxu0
    %130 = vdwg.mxu0
    %v131 = vld [vmem:[#allocation2 + $0x10] sm:$0xf]
    %132 = vrot.lane.b32.xlu0 %v31, 126
    %v133 = vpop.permute.xlu0 %132
    %v135 = vsel %vm37, %v131, 0
    %v138 = vsel %vm41, %v133, 0
    %140 = vmatprep.subr.bf16.mxu0 0
    %141 = vmatpush1.bf16.msra.mxu0 0
    %142 = vmatprep.subr.bf16.mxu0 0
    %143 = vmatpush1.bf16.msra.mxu0 0
    %144 = vmatprep.subr.bf16.mxu0 0
    %145 = vmatpush1.bf16.msra.mxu0 0
    %146 = vmatprep.subr.bf16.mxu0 0
    %147 = vmatpush1.bf16.msra.mxu0 0
    %148 = vmatprep.subr.bf16.mxu0 0
    %149 = vmatpush1.bf16.msra.mxu0 0
    %150 = vmatprep.subr.bf16.mxu0 0
    %151 = vmatpush1.bf16.msra.mxu0 0
    %152 = vmatprep.subr.bf16.mxu0 0
    %153 = vmatpush1.bf16.msra.mxu0 0
    %154 = vmatprep.subr.bf16.mxu0 0
    %155 = vmatpush1.bf16.msra.mxu0 %v138
    %156 = vmatprep.subr.bf16.mxu0 0
    %157 = vmatpush2.bf16.msra.mxu0 0
    %158 = vmatprep.subr.bf16.mxu0 0
    %159 = vmatpush2.bf16.msra.mxu0 0
    %160 = vmatprep.subr.bf16.mxu0 0
    %161 = vmatpush2.bf16.msra.mxu0 0
    %162 = vmatprep.subr.bf16.mxu0 0
    %163 = vmatpush2.bf16.msra.mxu0 0
    %164 = vmatprep.subr.bf16.mxu0 0
    %165 = vmatpush2.bf16.msra.mxu0 0
    %166 = vmatprep.subr.bf16.mxu0 0
    %167 = vmatpush2.bf16.msra.mxu0 0
    %168 = vmatprep.subr.bf16.mxu0 0
    %169 = vmatpush2.bf16.msra.mxu0 0
    %170 = vmatprep.subr.bf16.mxu0 0
    %171 = vmatpush2.bf16.msra.mxu0 0
    %172 = vmatprep.mubr.bf16.mxu0 0
    %173 = vmatmul.mubr.bf16.gmra.mxu0 %v135
    %v174 = vpop.f32.mrf.mxu0
    %v175 = vadd.f32 0.0, %v174
    %v176 = vpop.f32.mrf.mxu0
    %v177 = vpop.f32.mrf.mxu0
    %v178 = vpop.f32.mrf.mxu0
    %179 = vdwg.mxu0
    %v180 = vadd.f32 %v126, %v175
    %s181 = scalar_lea.vmem %s0, 4
    %v182 = vld [vmem:[%s181] sm:$0xf]
    %v183 = vpack.c.bf16 %v182, %v182
    %185 = vrot.lane.b32.xlu0 %v183, 127
    %v186 = vpop.permute.xlu0 %185
    %v188 = vsel %vm41, %v186, 0
    %190 = vmatprep.subr.bf16.mxu0 0
    %191 = vmatpush1.bf16.msra.mxu0 0
    %192 = vmatprep.subr.bf16.mxu0 0
    %193 = vmatpush1.bf16.msra.mxu0 0
    %194 = vmatprep.subr.bf16.mxu0 0
    %195 = vmatpush1.bf16.msra.mxu0 0
    %196 = vmatprep.subr.bf16.mxu0 0
    %197 = vmatpush1.bf16.msra.mxu0 0
    %198 = vmatprep.subr.bf16.mxu0 0
    %199 = vmatpush1.bf16.msra.mxu0 0
    %200 = vmatprep.subr.bf16.mxu0 0
    %201 = vmatpush1.bf16.msra.mxu0 0
    %202 = vmatprep.subr.bf16.mxu0 0
    %203 = vmatpush1.bf16.msra.mxu0 0
    %204 = vmatprep.subr.bf16.mxu0 0
    %205 = vmatpush1.bf16.msra.mxu0 %v188
    %206 = vmatprep.subr.bf16.mxu0 0
    %207 = vmatpush2.bf16.msra.mxu0 0
    %208 = vmatprep.subr.bf16.mxu0 0
    %209 = vmatpush2.bf16.msra.mxu0 0
    %210 = vmatprep.subr.bf16.mxu0 0
    %211 = vmatpush2.bf16.msra.mxu0 0
    %212 = vmatprep.subr.bf16.mxu0 0
    %213 = vmatpush2.bf16.msra.mxu0 0
    %214 = vmatprep.subr.bf16.mxu0 0
    %215 = vmatpush2.bf16.msra.mxu0 0
    %216 = vmatprep.subr.bf16.mxu0 0
    %217 = vmatpush2.bf16.msra.mxu0 0
    %218 = vmatprep.subr.bf16.mxu0 0
    %219 = vmatpush2.bf16.msra.mxu0 0
    %220 = vmatprep.subr.bf16.mxu0 0
    %221 = vmatpush2.bf16.msra.mxu0 0
    %222 = vmatprep.mubr.bf16.mxu0 0
    %223 = vmatmul.mubr.bf16.gmra.mxu0 %v39
    %v224 = vpop.f32.mrf.mxu0
    %v225 = vadd.f32 0.0, %v224
    %v226 = vpop.f32.mrf.mxu0
    %v227 = vpop.f32.mrf.mxu0
    %v228 = vpop.f32.mrf.mxu0
    %229 = vdwg.mxu0
    %v231 = vsel %vm41, %v183, 0
    %233 = vmatprep.subr.bf16.mxu0 0
    %234 = vmatpush1.bf16.msra.mxu0 0
    %235 = vmatprep.subr.bf16.mxu0 0
    %236 = vmatpush1.bf16.msra.mxu0 0
    %237 = vmatprep.subr.bf16.mxu0 0
    %238 = vmatpush1.bf16.msra.mxu0 0
    %239 = vmatprep.subr.bf16.mxu0 0
    %240 = vmatpush1.bf16.msra.mxu0 0
    %241 = vmatprep.subr.bf16.mxu0 0
    %242 = vmatpush1.bf16.msra.mxu0 0
    %243 = vmatprep.subr.bf16.mxu0 0
    %244 = vmatpush1.bf16.msra.mxu0 0
    %245 = vmatprep.subr.bf16.mxu0 0
    %246 = vmatpush1.bf16.msra.mxu0 0
    %247 = vmatprep.subr.bf16.mxu0 0
    %248 = vmatpush1.bf16.msra.mxu0 %v231
    %249 = vmatprep.subr.bf16.mxu0 0
    %250 = vmatpush2.bf16.msra.mxu0 0
    %251 = vmatprep.subr.bf16.mxu0 0
    %252 = vmatpush2.bf16.msra.mxu0 0
    %253 = vmatprep.subr.bf16.mxu0 0
    %254 = vmatpush2.bf16.msra.mxu0 0
    %255 = vmatprep.subr.bf16.mxu0 0
    %256 = vmatpush2.bf16.msra.mxu0 0
    %257 = vmatprep.subr.bf16.mxu0 0
    %258 = vmatpush2.bf16.msra.mxu0 0
    %259 = vmatprep.subr.bf16.mxu0 0
    %260 = vmatpush2.bf16.msra.mxu0 0
    %261 = vmatprep.subr.bf16.mxu0 0
    %262 = vmatpush2.bf16.msra.mxu0 0
    %263 = vmatprep.subr.bf16.mxu0 0
    %264 = vmatpush2.bf16.msra.mxu0 0
    %265 = vmatprep.mubr.bf16.mxu0 0
    %266 = vmatmul.mubr.bf16.gmra.mxu0 %v86
    %v267 = vpop.f32.mrf.mxu0
    %v268 = vadd.f32 %v225, %v267
    %v269 = vpop.f32.mrf.mxu0
    %v270 = vpop.f32.mrf.mxu0
    %v271 = vpop.f32.mrf.mxu0
    %272 = vdwg.mxu0
    %273 = vrot.lane.b32.xlu0 %v183, 126
    %v274 = vpop.permute.xlu0 %273
    %v276 = vsel %vm41, %v274, 0
    %278 = vmatprep.subr.bf16.mxu0 0
    %279 = vmatpush1.bf16.msra.mxu0 0
    %280 = vmatprep.subr.bf16.mxu0 0
    %281 = vmatpush1.bf16.msra.mxu0 0
    %282 = vmatprep.subr.bf16.mxu0 0
    %283 = vmatpush1.bf16.msra.mxu0 0
    %284 = vmatprep.subr.bf16.mxu0 0
    %285 = vmatpush1.bf16.msra.mxu0 0
    %286 = vmatprep.subr.bf16.mxu0 0
    %287 = vmatpush1.bf16.msra.mxu0 0
    %288 = vmatprep.subr.bf16.mxu0 0
    %289 = vmatpush1.bf16.msra.mxu0 0
    %290 = vmatprep.subr.bf16.mxu0 0
    %291 = vmatpush1.bf16.msra.mxu0 0
    %292 = vmatprep.subr.bf16.mxu0 0
    %293 = vmatpush1.bf16.msra.mxu0 %v276
    %294 = vmatprep.subr.bf16.mxu0 0
    %295 = vmatpush2.bf16.msra.mxu0 0
    %296 = vmatprep.subr.bf16.mxu0 0
    %297 = vmatpush2.bf16.msra.mxu0 0
    %298 = vmatprep.subr.bf16.mxu0 0
    %299 = vmatpush2.bf16.msra.mxu0 0
    %300 = vmatprep.subr.bf16.mxu0 0
    %301 = vmatpush2.bf16.msra.mxu0 0
    %302 = vmatprep.subr.bf16.mxu0 0
    %303 = vmatpush2.bf16.msra.mxu0 0
    %304 = vmatprep.subr.bf16.mxu0 0
    %305 = vmatpush2.bf16.msra.mxu0 0
    %306 = vmatprep.subr.bf16.mxu0 0
    %307 = vmatpush2.bf16.msra.mxu0 0
    %308 = vmatprep.subr.bf16.mxu0 0
    %309 = vmatpush2.bf16.msra.mxu0 0
    %310 = vmatprep.mubr.bf16.mxu0 0
    %311 = vmatmul.mubr.bf16.gmra.mxu0 %v135
    %v312 = vpop.f32.mrf.mxu0
    %v313 = vadd.f32 0.0, %v312
    %v314 = vpop.f32.mrf.mxu0
    %v315 = vpop.f32.mrf.mxu0
    %v316 = vpop.f32.mrf.mxu0
    %317 = vdwg.mxu0
    %v318 = vadd.f32 %v268, %v313
    %320 = vrot.lane.b32.xlu0 %v318, 14
    %v321 = vpop.permute.xlu0 %320
    %vm323 = vcmask 113664
    %v324 = vsel %vm323, %v180, %v321
    %v325 = vld [vmem:[%s2] sm:$0xff]
    %v326 = vlaneseq
    %v327 = vand.u32 %v326, 127
    %vm328 = vcmp.lt.s32.totalorder %v327, 14
    %vm329 = vcmp.ge.s32.totalorder %v327, 14
    %vm330 = vcmp.lt.s32.totalorder %v327, 28
    %vm331 = vmand %vm329, %vm330
    %vm332 = vmor %vm328, %vm331
    %v333 = vsel %vm332, 1, 0
    %vm334 = vcmp.eq.s32.totalorder %v333, 1
    %v335 = vsel %vm334, %v324, 0.0
    %vm336 = vcmask 228352
    %v337 = vsel %vm336, %v335, 0.0
    %338 = vadd.xlane.f32.xlu0 %v337
    %v339 = vpop.xlane.xlu0 %338
    %v340 = vmul.f32 %v339, 0.035714287
    %v341 = vsub.f32 %v324, %v340
    %v342 = vmul.f32 %v341, %v341
    %v343 = vsel %vm334, %v342, 0.0
    %v344 = vsel %vm336, %v343, 0.0
    %345 = vadd.xlane.f32.xlu0 %v344
    %v346 = vpop.xlane.xlu0 %345
    %v347 = vmul.f32 %v346, 0.035714287
    %v348 = vadd.f32 %v347, 1e-05
    %v349 = vrsqrt.pop %v348
    %v350 = vmul.f32 %v325, %v349
    %v351 = vmul.f32 %v340, %v350
    %353 = vrot.lane.b32.xlu0 %v351, 1
    %v354 = vpop.permute.xlu0 %353
    %v356 = vsub.f32 %v325, %v354
    %358 = vset.pattern.permute.xlu0 0
    %359 = vperm.xlu0 %358, %v350
    %v360 = vpop.permute.xlu0 %359
    %v362 = vmul.f32 %v324, %v360
    %364 = vset.pattern.permute.xlu0 1
    %365 = vperm.xlu0 %364, %v356
    %v366 = vpop.permute.xlu0 %365
    %v368 = vadd.f32 %v362, %v366
    %v369 = vmul.f32 %v368, 0.01
    %v370 = vmax.f32 %v368, %v369
    %v371 = vpack.c.bf16 %v370, %v370
    %v372 = vld [vmem:[#allocation2 + $0x18] sm:$0xf]
    %v373 = vld [vmem:[#allocation2 + $0x1c] sm:$0xf]
    %v374 = vld [vmem:[#allocation2 + $0x20] sm:$0xf]
    %v375 = vld [vmem:[#allocation2 + $0x24] sm:$0xf]
    %v376 = vld [vmem:[#allocation2 + $0x28] sm:$0xf]
    %v377 = vld [vmem:[#allocation2 + $0x2c] sm:$0xf]
    %v378 = vld [vmem:[#allocation2 + $0x30] sm:$0xf]
    %v379 = vld [vmem:[#allocation2 + $0x34] sm:$0xf]
    %v380 = vld [vmem:[#allocation2 + $0x38] sm:$0xf]
    %v381 = vld [vmem:[#allocation2 + $0x3c] sm:$0xf]
    %v382 = vld [vmem:[#allocation2 + $0x40] sm:$0xf]
    %v383 = vld [vmem:[#allocation2 + $0x44] sm:$0xf]
    %v384 = vld [vmem:[#allocation2 + $0x48] sm:$0xf]
    %v385 = vld [vmem:[#allocation2 + $0x4c] sm:$0xf]
    %v386 = vld [vmem:[#allocation2 + $0x50] sm:$0xf]
    %v387 = vld [vmem:[#allocation2 + $0x54] sm:$0xf]
    %v388 = vld [vmem:[#allocation2 + $0x58] sm:$0xf]
    %v389 = vld [vmem:[#allocation2 + $0x5c] sm:$0xf]
    %v390 = vld [vmem:[#allocation2 + $0x60] sm:$0xf]
    %v391 = vld [vmem:[#allocation2 + $0x64] sm:$0xf]
    %v392 = vld [vmem:[#allocation2 + $0x68] sm:$0xf]
    %v393 = vld [vmem:[#allocation2 + $0x6c] sm:$0xf]
    %v394 = vld [vmem:[#allocation2 + $0x70] sm:$0xf]
    %v395 = vld [vmem:[#allocation2 + $0x74] sm:$0xf]
    %v396 = vld [vmem:[#allocation2 + $0x78] sm:$0xf]
    %v397 = vld [vmem:[#allocation2 + $0x7c] sm:$0xf]
    %v398 = vld [vmem:[#allocation2 + $0x80] sm:$0xf]
    %v399 = vld [vmem:[#allocation2 + $0x84] sm:$0xf]
    %v400 = vld [vmem:[#allocation2 + $0x88] sm:$0xf]
    %v401 = vld [vmem:[#allocation2 + $0x8c] sm:$0xf]
    %v402 = vld [vmem:[#allocation2 + $0x90] sm:$0xf]
    %v403 = vld [vmem:[#allocation2 + $0x94] sm:$0xf]
    %v420 = vunpack.c.l.b16 %v388
    %v421 = vunpack.c.l.b16 %v389
    %v422 = vunpack.c.l.b16 %v390
    %v423 = vunpack.c.l.b16 %v391
    %v424 = vunpack.c.l.b16 %v392
    %v425 = vunpack.c.l.b16 %v393
    %v426 = vunpack.c.l.b16 %v394
    %v427 = vunpack.c.l.b16 %v395
    %v428 = vunpack.c.l.b16 %v396
    %v429 = vunpack.c.l.b16 %v397
    %v430 = vunpack.c.l.b16 %v398
    %v431 = vunpack.c.l.b16 %v399
    %v432 = vunpack.c.l.b16 %v400
    %v433 = vunpack.c.l.b16 %v401
    %v434 = vunpack.c.l.b16 %v402
    %v435 = vunpack.c.l.b16 %v403
    %v436 = vpack.c.b16 %v421, %v420
    %v437 = vpack.c.b16 %v423, %v422
    %v438 = vpack.c.b16 %v425, %v424
    %v439 = vpack.c.b16 %v427, %v426
    %v440 = vpack.c.b16 %v429, %v428
    %v441 = vpack.c.b16 %v431, %v430
    %v442 = vpack.c.b16 %v433, %v432
    %v443 = vpack.c.b16 %v435, %v434
    %445 = vrot.lane.b32.xlu0 %v371, 127
    %v446 = vpop.permute.xlu0 %445
    %vm447 = vcmask 64512
    %v449 = vsel %vm447, %v436, 0
    %v452 = vsel %vm447, %v437, 0
    %v455 = vsel %vm447, %v438, 0
    %v458 = vsel %vm447, %v439, 0
    %v461 = vsel %vm447, %v440, 0
    %v464 = vsel %vm447, %v441, 0
    %v467 = vsel %vm447, %v442, 0
    %v470 = vsel %vm447, %v443, 0
    %vm472 = vcmask 1043456
    %v474 = vsel %vm472, %v446, 0
    %476 = vmatprep.subr.bf16.mxu0 0
    %477 = vmatpush1.bf16.msra.mxu0 0
    %478 = vmatprep.subr.bf16.mxu0 0
    %479 = vmatpush1.bf16.msra.mxu0 0
    %480 = vmatprep.subr.bf16.mxu0 0
    %481 = vmatpush1.bf16.msra.mxu0 0
    %482 = vmatprep.subr.bf16.mxu0 0
    %483 = vmatpush1.bf16.msra.mxu0 0
    %484 = vmatprep.subr.bf16.mxu0 0
    %485 = vmatpush1.bf16.msra.mxu0 0
    %486 = vmatprep.subr.bf16.mxu0 0
    %487 = vmatpush1.bf16.msra.mxu0 0
    %488 = vmatprep.subr.bf16.mxu0 0
    %489 = vmatpush1.bf16.msra.mxu0 0
    %490 = vmatprep.subr.bf16.mxu0 0
    %491 = vmatpush1.bf16.msra.mxu0 %v474
    %492 = vmatprep.subr.bf16.mxu0 0
    %493 = vmatpush2.bf16.msra.mxu0 0
    %494 = vmatprep.subr.bf16.mxu0 0
    %495 = vmatpush2.bf16.msra.mxu0 0
    %496 = vmatprep.subr.bf16.mxu0 0
    %497 = vmatpush2.bf16.msra.mxu0 0
    %498 = vmatprep.subr.bf16.mxu0 0
    %499 = vmatpush2.bf16.msra.mxu0 0
    %500 = vmatprep.subr.bf16.mxu0 0
    %501 = vmatpush2.bf16.msra.mxu0 0
    %502 = vmatprep.subr.bf16.mxu0 0
    %503 = vmatpush2.bf16.msra.mxu0 0
    %504 = vmatprep.subr.bf16.mxu0 0
    %505 = vmatpush2.bf16.msra.mxu0 0
    %506 = vmatprep.subr.bf16.mxu0 0
    %507 = vmatpush2.bf16.msra.mxu0 0
    %508 = vmatprep.mubr.bf16.mxu0 0
    %509 = vmatmul.mubr.bf16.gmra.mxu0 %v449
    %v510 = vpop.f32.mrf.mxu0
    %v511 = vadd.f32 0.0, %v510
    %v512 = vpop.f32.mrf.mxu0
    %v513 = vpop.f32.mrf.mxu0
    %v514 = vadd.f32 0.0, %v513
    %v515 = vpop.f32.mrf.mxu0
    %516 = vmatprep.mubr.bf16.mxu0 0
    %517 = vmatmul.mubr.bf16.gmra.mxu0 %v452
    %v518 = vpop.f32.mrf.mxu0
    %v519 = vadd.f32 0.0, %v518
    %v520 = vpop.f32.mrf.mxu0
    %v521 = vpop.f32.mrf.mxu0
    %v522 = vadd.f32 0.0, %v521
    %v523 = vpop.f32.mrf.mxu0
    %524 = vmatprep.mubr.bf16.mxu0 0
    %525 = vmatmul.mubr.bf16.gmra.mxu0 %v455
    %v526 = vpop.f32.mrf.mxu0
    %v527 = vadd.f32 0.0, %v526
    %v528 = vpop.f32.mrf.mxu0
    %v529 = vpop.f32.mrf.mxu0
    %v530 = vadd.f32 0.0, %v529
    %v531 = vpop.f32.mrf.mxu0
    %532 = vmatprep.mubr.bf16.mxu0 0
    %533 = vmatmul.mubr.bf16.gmra.mxu0 %v458
    %v534 = vpop.f32.mrf.mxu0
    %v535 = vadd.f32 0.0, %v534
    %v536 = vpop.f32.mrf.mxu0
    %v537 = vpop.f32.mrf.mxu0
    %v538 = vadd.f32 0.0, %v537
    %v539 = vpop.f32.mrf.mxu0
    %540 = vmatprep.mubr.bf16.mxu0 0
    %541 = vmatmul.mubr.bf16.gmra.mxu0 %v461
    %v542 = vpop.f32.mrf.mxu0
    %v543 = vadd.f32 0.0, %v542
    %v544 = vpop.f32.mrf.mxu0
    %v545 = vpop.f32.mrf.mxu0
    %v546 = vadd.f32 0.0, %v545
    %v547 = vpop.f32.mrf.mxu0
    %548 = vmatprep.mubr.bf16.mxu0 0
    %549 = vmatmul.mubr.bf16.gmra.mxu0 %v464
    %v550 = vpop.f32.mrf.mxu0
    %v551 = vadd.f32 0.0, %v550
    %v552 = vpop.f32.mrf.mxu0
    %v553 = vpop.f32.mrf.mxu0
    %v554 = vadd.f32 0.0, %v553
    %v555 = vpop.f32.mrf.mxu0
    %556 = vmatprep.mubr.bf16.mxu0 0
    %557 = vmatmul.mubr.bf16.gmra.mxu0 %v467
    %v558 = vpop.f32.mrf.mxu0
    %v559 = vadd.f32 0.0, %v558
    %v560 = vpop.f32.mrf.mxu0
    %v561 = vpop.f32.mrf.mxu0
    %v562 = vadd.f32 0.0, %v561
    %v563 = vpop.f32.mrf.mxu0
    %564 = vmatprep.mubr.bf16.mxu0 0
    %565 = vmatmul.mubr.bf16.gmra.mxu0 %v470
    %v566 = vpop.f32.mrf.mxu0
    %v567 = vadd.f32 0.0, %v566
    %v568 = vpop.f32.mrf.mxu0
    %v569 = vpop.f32.mrf.mxu0
    %v570 = vadd.f32 0.0, %v569
    %v571 = vpop.f32.mrf.mxu0
    %572 = vdwg.mxu0
    %v589 = vunpack.c.l.b16 %v372
    %v590 = vunpack.c.l.b16 %v373
    %v591 = vunpack.c.l.b16 %v374
    %v592 = vunpack.c.l.b16 %v375
    %v593 = vunpack.c.l.b16 %v376
    %v594 = vunpack.c.l.b16 %v377
    %v595 = vunpack.c.l.b16 %v378
    %v596 = vunpack.c.l.b16 %v379
    %v597 = vunpack.c.l.b16 %v380
    %v598 = vunpack.c.l.b16 %v381
    %v599 = vunpack.c.l.b16 %v382
    %v600 = vunpack.c.l.b16 %v383
    %v601 = vunpack.c.l.b16 %v384
    %v602 = vunpack.c.l.b16 %v385
    %v603 = vunpack.c.l.b16 %v386
    %v604 = vunpack.c.l.b16 %v387
    %v605 = vpack.c.b16 %v590, %v589
    %v606 = vpack.c.b16 %v592, %v591
    %v607 = vpack.c.b16 %v594, %v593
    %v608 = vpack.c.b16 %v596, %v595
    %v609 = vpack.c.b16 %v598, %v597
    %v610 = vpack.c.b16 %v600, %v599
    %v611 = vpack.c.b16 %v602, %v601
    %v612 = vpack.c.b16 %v604, %v603
    %v614 = vsel %vm447, %v605, 0
    %v617 = vsel %vm447, %v606, 0
    %v620 = vsel %vm447, %v607, 0
    %v623 = vsel %vm447, %v608, 0
    %v626 = vsel %vm447, %v609, 0
    %v629 = vsel %vm447, %v610, 0
    %v632 = vsel %vm447, %v611, 0
    %v635 = vsel %vm447, %v612, 0
    %v638 = vsel %vm472, %v371, 0
    %640 = vmatprep.subr.bf16.mxu0 0
    %641 = vmatpush1.bf16.msra.mxu0 0
    %642 = vmatprep.subr.bf16.mxu0 0
    %643 = vmatpush1.bf16.msra.mxu0 0
    %644 = vmatprep.subr.bf16.mxu0 0
    %645 = vmatpush1.bf16.msra.mxu0 0
    %646 = vmatprep.subr.bf16.mxu0 0
    %647 = vmatpush1.bf16.msra.mxu0 0
    %648 = vmatprep.subr.bf16.mxu0 0
    %649 = vmatpush1.bf16.msra.mxu0 0
    %650 = vmatprep.subr.bf16.mxu0 0
    %651 = vmatpush1.bf16.msra.mxu0 0
    %652 = vmatprep.subr.bf16.mxu0 0
    %653 = vmatpush1.bf16.msra.mxu0 0
    %654 = vmatprep.subr.bf16.mxu0 0
    %655 = vmatpush1.bf16.msra.mxu0 %v638
    %656 = vmatprep.subr.bf16.mxu0 0
    %657 = vmatpush2.bf16.msra.mxu0 0
    %658 = vmatprep.subr.bf16.mxu0 0
    %659 = vmatpush2.bf16.msra.mxu0 0
    %660 = vmatprep.subr.bf16.mxu0 0
    %661 = vmatpush2.bf16.msra.mxu0 0
    %662 = vmatprep.subr.bf16.mxu0 0
    %663 = vmatpush2.bf16.msra.mxu0 0
    %664 = vmatprep.subr.bf16.mxu0 0
    %665 = vmatpush2.bf16.msra.mxu0 0
    %666 = vmatprep.subr.bf16.mxu0 0
    %667 = vmatpush2.bf16.msra.mxu0 0
    %668 = vmatprep.subr.bf16.mxu0 0
    %669 = vmatpush2.bf16.msra.mxu0 0
    %670 = vmatprep.subr.bf16.mxu0 0
    %671 = vmatpush2.bf16.msra.mxu0 0
    %672 = vmatprep.mubr.bf16.mxu0 0
    %673 = vmatmul.mubr.bf16.gmra.mxu0 %v614
    %v674 = vpop.f32.mrf.mxu0
    %v675 = vadd.f32 %v511, %v674
    %v676 = vpop.f32.mrf.mxu0
    %v677 = vpop.f32.mrf.mxu0
    %v678 = vadd.f32 %v514, %v677
    %v679 = vpop.f32.mrf.mxu0
    %680 = vmatprep.mubr.bf16.mxu0 0
    %681 = vmatmul.mubr.bf16.gmra.mxu0 %v617
    %v682 = vpop.f32.mrf.mxu0
    %v683 = vadd.f32 %v519, %v682
    %v684 = vpop.f32.mrf.mxu0
    %v685 = vpop.f32.mrf.mxu0
    %v686 = vadd.f32 %v522, %v685
    %v687 = vpop.f32.mrf.mxu0
    %688 = vmatprep.mubr.bf16.mxu0 0
    %689 = vmatmul.mubr.bf16.gmra.mxu0 %v620
    %v690 = vpop.f32.mrf.mxu0
    %v691 = vadd.f32 %v527, %v690
    %v692 = vpop.f32.mrf.mxu0
    %v693 = vpop.f32.mrf.mxu0
    %v694 = vadd.f32 %v530, %v693
    %v695 = vpop.f32.mrf.mxu0
    %696 = vmatprep.mubr.bf16.mxu0 0
    %697 = vmatmul.mubr.bf16.gmra.mxu0 %v623
    %v698 = vpop.f32.mrf.mxu0
    %v699 = vadd.f32 %v535, %v698
    %v700 = vpop.f32.mrf.mxu0
    %v701 = vpop.f32.mrf.mxu0
    %v702 = vadd.f32 %v538, %v701
    %v703 = vpop.f32.mrf.mxu0
    %704 = vmatprep.mubr.bf16.mxu0 0
    %705 = vmatmul.mubr.bf16.gmra.mxu0 %v626
    %v706 = vpop.f32.mrf.mxu0
    %v707 = vadd.f32 %v543, %v706
    %v708 = vpop.f32.mrf.mxu0
    %v709 = vpop.f32.mrf.mxu0
    %v710 = vadd.f32 %v546, %v709
    %v711 = vpop.f32.mrf.mxu0
    %712 = vmatprep.mubr.bf16.mxu0 0
    %713 = vmatmul.mubr.bf16.gmra.mxu0 %v629
    %v714 = vpop.f32.mrf.mxu0
    %v715 = vadd.f32 %v551, %v714
    %v716 = vpop.f32.mrf.mxu0
    %v717 = vpop.f32.mrf.mxu0
    %v718 = vadd.f32 %v554, %v717
    %v719 = vpop.f32.mrf.mxu0
    %720 = vmatprep.mubr.bf16.mxu0 0
    %721 = vmatmul.mubr.bf16.gmra.mxu0 %v632
    %v722 = vpop.f32.mrf.mxu0
    %v723 = vadd.f32 %v559, %v722
    %v724 = vpop.f32.mrf.mxu0
    %v725 = vpop.f32.mrf.mxu0
    %v726 = vadd.f32 %v562, %v725
    %v727 = vpop.f32.mrf.mxu0
    %728 = vmatprep.mubr.bf16.mxu0 0
    %729 = vmatmul.mubr.bf16.gmra.mxu0 %v635
    %v730 = vpop.f32.mrf.mxu0
    %v731 = vadd.f32 %v567, %v730
    %v732 = vpop.f32.mrf.mxu0
    %v733 = vpop.f32.mrf.mxu0
    %v734 = vadd.f32 %v570, %v733
    %v735 = vpop.f32.mrf.mxu0
    %736 = vdwg.mxu0
    %v737 = vld [vmem:[#allocation2 + $0x98] sm:$0xf]
    %v738 = vld [vmem:[#allocation2 + $0x9c] sm:$0xf]
    %v739 = vld [vmem:[#allocation2 + $0xa0] sm:$0xf]
    %v740 = vld [vmem:[#allocation2 + $0xa4] sm:$0xf]
    %v741 = vld [vmem:[#allocation2 + $0xa8] sm:$0xf]
    %v742 = vld [vmem:[#allocation2 + $0xac] sm:$0xf]
    %v743 = vld [vmem:[#allocation2 + $0xb0] sm:$0xf]
    %v744 = vld [vmem:[#allocation2 + $0xb4] sm:$0xf]
    %v745 = vld [vmem:[#allocation2 + $0xb8] sm:$0xf]
    %v746 = vld [vmem:[#allocation2 + $0xbc] sm:$0xf]
    %v747 = vld [vmem:[#allocation2 + $0xc0] sm:$0xf]
    %v748 = vld [vmem:[#allocation2 + $0xc4] sm:$0xf]
    %v749 = vld [vmem:[#allocation2 + $0xc8] sm:$0xf]
    %v750 = vld [vmem:[#allocation2 + $0xcc] sm:$0xf]
    %v751 = vld [vmem:[#allocation2 + $0xd0] sm:$0xf]
    %v752 = vld [vmem:[#allocation2 + $0xd4] sm:$0xf]
    %v769 = vunpack.c.l.b16 %v737
    %v770 = vunpack.c.l.b16 %v738
    %v771 = vunpack.c.l.b16 %v739
    %v772 = vunpack.c.l.b16 %v740
    %v773 = vunpack.c.l.b16 %v741
    %v774 = vunpack.c.l.b16 %v742
    %v775 = vunpack.c.l.b16 %v743
    %v776 = vunpack.c.l.b16 %v744
    %v777 = vunpack.c.l.b16 %v745
    %v778 = vunpack.c.l.b16 %v746
    %v779 = vunpack.c.l.b16 %v747
    %v780 = vunpack.c.l.b16 %v748
    %v781 = vunpack.c.l.b16 %v749
    %v782 = vunpack.c.l.b16 %v750
    %v783 = vunpack.c.l.b16 %v751
    %v784 = vunpack.c.l.b16 %v752
    %v785 = vpack.c.b16 %v770, %v769
    %v786 = vpack.c.b16 %v772, %v771
    %v787 = vpack.c.b16 %v774, %v773
    %v788 = vpack.c.b16 %v776, %v775
    %v789 = vpack.c.b16 %v778, %v777
    %v790 = vpack.c.b16 %v780, %v779
    %v791 = vpack.c.b16 %v782, %v781
    %v792 = vpack.c.b16 %v784, %v783
    %793 = vrot.lane.b32.xlu0 %v371, 126
    %v794 = vpop.permute.xlu0 %793
    %v796 = vsel %vm447, %v785, 0
    %v799 = vsel %vm447, %v786, 0
    %v802 = vsel %vm447, %v787, 0
    %v805 = vsel %vm447, %v788, 0
    %v808 = vsel %vm447, %v789, 0
    %v811 = vsel %vm447, %v790, 0
    %v814 = vsel %vm447, %v791, 0
    %v817 = vsel %vm447, %v792, 0
    %v820 = vsel %vm472, %v794, 0
    %822 = vmatprep.subr.bf16.mxu0 0
    %823 = vmatpush1.bf16.msra.mxu0 0
    %824 = vmatprep.subr.bf16.mxu0 0
    %825 = vmatpush1.bf16.msra.mxu0 0
    %826 = vmatprep.subr.bf16.mxu0 0
    %827 = vmatpush1.bf16.msra.mxu0 0
    %828 = vmatprep.subr.bf16.mxu0 0
    %829 = vmatpush1.bf16.msra.mxu0 0
    %830 = vmatprep.subr.bf16.mxu0 0
    %831 = vmatpush1.bf16.msra.mxu0 0
    %832 = vmatprep.subr.bf16.mxu0 0
    %833 = vmatpush1.bf16.msra.mxu0 0
    %834 = vmatprep.subr.bf16.mxu0 0
    %835 = vmatpush1.bf16.msra.mxu0 0
    %836 = vmatprep.subr.bf16.mxu0 0
    %837 = vmatpush1.bf16.msra.mxu0 %v820
    %838 = vmatprep.subr.bf16.mxu0 0
    %839 = vmatpush2.bf16.msra.mxu0 0
    %840 = vmatprep.subr.bf16.mxu0 0
    %841 = vmatpush2.bf16.msra.mxu0 0
    %842 = vmatprep.subr.bf16.mxu0 0
    %843 = vmatpush2.bf16.msra.mxu0 0
    %844 = vmatprep.subr.bf16.mxu0 0
    %845 = vmatpush2.bf16.msra.mxu0 0
    %846 = vmatprep.subr.bf16.mxu0 0
    %847 = vmatpush2.bf16.msra.mxu0 0
    %848 = vmatprep.subr.bf16.mxu0 0
    %849 = vmatpush2.bf16.msra.mxu0 0
    %850 = vmatprep.subr.bf16.mxu0 0
    %851 = vmatpush2.bf16.msra.mxu0 0
    %852 = vmatprep.subr.bf16.mxu0 0
    %853 = vmatpush2.bf16.msra.mxu0 0
    %854 = vmatprep.mubr.bf16.mxu0 0
    %855 = vmatmul.mubr.bf16.gmra.mxu0 %v796
    %v856 = vpop.f32.mrf.mxu0
    %v857 = vadd.f32 0.0, %v856
    %v858 = vpop.f32.mrf.mxu0
    %v859 = vpop.f32.mrf.mxu0
    %v860 = vadd.f32 0.0, %v859
    %v861 = vpop.f32.mrf.mxu0
    %862 = vmatprep.mubr.bf16.mxu0 0
    %863 = vmatmul.mubr.bf16.gmra.mxu0 %v799
    %v864 = vpop.f32.mrf.mxu0
    %v865 = vadd.f32 0.0, %v864
    %v866 = vpop.f32.mrf.mxu0
    %v867 = vpop.f32.mrf.mxu0
    %v868 = vadd.f32 0.0, %v867
    %v869 = vpop.f32.mrf.mxu0
    %870 = vmatprep.mubr.bf16.mxu0 0
    %871 = vmatmul.mubr.bf16.gmra.mxu0 %v802
    %v872 = vpop.f32.mrf.mxu0
    %v873 = vadd.f32 0.0, %v872
    %v874 = vpop.f32.mrf.mxu0
    %v875 = vpop.f32.mrf.mxu0
    %v876 = vadd.f32 0.0, %v875
    %v877 = vpop.f32.mrf.mxu0
    %878 = vmatprep.mubr.bf16.mxu0 0
    %879 = vmatmul.mubr.bf16.gmra.mxu0 %v805
    %v880 = vpop.f32.mrf.mxu0
    %v881 = vadd.f32 0.0, %v880
    %v882 = vpop.f32.mrf.mxu0
    %v883 = vpop.f32.mrf.mxu0
    %v884 = vadd.f32 0.0, %v883
    %v885 = vpop.f32.mrf.mxu0
    %886 = vmatprep.mubr.bf16.mxu0 0
    %887 = vmatmul.mubr.bf16.gmra.mxu0 %v808
    %v888 = vpop.f32.mrf.mxu0
    %v889 = vadd.f32 0.0, %v888
    %v890 = vpop.f32.mrf.mxu0
    %v891 = vpop.f32.mrf.mxu0
    %v892 = vadd.f32 0.0, %v891
    %v893 = vpop.f32.mrf.mxu0
    %894 = vmatprep.mubr.bf16.mxu0 0
    %895 = vmatmul.mubr.bf16.gmra.mxu0 %v811
    %v896 = vpop.f32.mrf.mxu0
    %v897 = vadd.f32 0.0, %v896
    %v898 = vpop.f32.mrf.mxu0
    %v899 = vpop.f32.mrf.mxu0
    %v900 = vadd.f32 0.0, %v899
    %v901 = vpop.f32.mrf.mxu0
    %902 = vmatprep.mubr.bf16.mxu0 0
    %903 = vmatmul.mubr.bf16.gmra.mxu0 %v814
    %v904 = vpop.f32.mrf.mxu0
    %v905 = vadd.f32 0.0, %v904
    %v906 = vpop.f32.mrf.mxu0
    %v907 = vpop.f32.mrf.mxu0
    %v908 = vadd.f32 0.0, %v907
    %v909 = vpop.f32.mrf.mxu0
    %910 = vmatprep.mubr.bf16.mxu0 0
    %911 = vmatmul.mubr.bf16.gmra.mxu0 %v817
    %v912 = vpop.f32.mrf.mxu0
    %v913 = vadd.f32 0.0, %v912
    %v914 = vpop.f32.mrf.mxu0
    %v915 = vpop.f32.mrf.mxu0
    %v916 = vadd.f32 0.0, %v915
    %v917 = vpop.f32.mrf.mxu0
    %918 = vdwg.mxu0
    %v919 = vadd.f32 %v675, %v857
    %v920 = vadd.f32 %v678, %v860
    %v921 = vadd.f32 %v683, %v865
    %v922 = vadd.f32 %v686, %v868
    %v923 = vadd.f32 %v691, %v873
    %v924 = vadd.f32 %v694, %v876
    %v925 = vadd.f32 %v699, %v881
    %v926 = vadd.f32 %v702, %v884
    %v927 = vadd.f32 %v707, %v889
    %v928 = vadd.f32 %v710, %v892
    %v929 = vadd.f32 %v715, %v897
    %v930 = vadd.f32 %v718, %v900
    %v931 = vadd.f32 %v723, %v905
    %v932 = vadd.f32 %v726, %v908
    %v933 = vadd.f32 %v731, %v913
    %v934 = vadd.f32 %v734, %v916
    %v935 = vld [vmem:[%s2 + $0x8] sm:$0xff]
    %v936 = vld [vmem:[%s2 + $0x10] sm:$0xff]
    %v937 = vld [vmem:[%s2 + $0x18] sm:$0xff]
    %v938 = vld [vmem:[%s2 + $0x20] sm:$0xff]
    %v939 = vld [vmem:[%s2 + $0x28] sm:$0xff]
    %v940 = vld [vmem:[%s2 + $0x30] sm:$0xff]
    %v941 = vld [vmem:[%s2 + $0x38] sm:$0xff]
    %v942 = vld [vmem:[%s2 + $0x40] sm:$0xff]
    %v943 = vld [vmem:[%s2 + $0x48] sm:$0xff]
    %v944 = vld [vmem:[%s2 + $0x50] sm:$0xff]
    %v945 = vld [vmem:[%s2 + $0x58] sm:$0xff]
    %v946 = vld [vmem:[%s2 + $0x60] sm:$0xff]
    %v947 = vld [vmem:[%s2 + $0x68] sm:$0xff]
    %v948 = vld [vmem:[%s2 + $0x70] sm:$0xff]
    %v949 = vld [vmem:[%s2 + $0x78] sm:$0xff]
    %v950 = vld [vmem:[%s2 + $0x80] sm:$0xff]
    %vm951 = vcmp.lt.s32.totalorder %v327, 12
    %vm952 = vcmp.lt.s32.totalorder %v327, 26
    %vm953 = vmand %vm329, %vm952
    %vm954 = vmor %vm951, %vm953
    %v955 = vsel %vm954, 1, 0
    %vm956 = vcmp.eq.s32.totalorder %v955, 1
    %v957 = vsel %vm956, %v919, 0.0
    %v958 = vsel %vm956, %v920, 0.0
    %v959 = vsel %vm956, %v921, 0.0
    %v960 = vsel %vm956, %v922, 0.0
    %v961 = vsel %vm956, %v923, 0.0
    %v962 = vsel %vm956, %v924, 0.0
    %v963 = vsel %vm956, %v925, 0.0
    %v964 = vsel %vm956, %v926, 0.0
    %v965 = vsel %vm956, %v927, 0.0
    %v966 = vsel %vm956, %v928, 0.0
    %v967 = vsel %vm956, %v929, 0.0
    %v968 = vsel %vm956, %v930, 0.0
    %v969 = vsel %vm956, %v931, 0.0
    %v970 = vsel %vm956, %v932, 0.0
    %v971 = vsel %vm956, %v933, 0.0
    %v972 = vsel %vm956, %v934, 0.0
    %vm973 = vcmask 211968
    %v974 = vsel %vm973, %v957, 0.0
    %975 = vadd.xlane.f32.xlu0 %v974
    %v976 = vpop.xlane.xlu0 %975
    %v977 = vsel %vm973, %v958, 0.0
    %978 = vadd.xlane.f32.xlu0 %v977
    %v979 = vpop.xlane.xlu0 %978
    %v980 = vsel %vm973, %v959, 0.0
    %981 = vadd.xlane.f32.xlu0 %v980
    %v982 = vpop.xlane.xlu0 %981
    %v983 = vsel %vm973, %v960, 0.0
    %984 = vadd.xlane.f32.xlu0 %v983
    %v985 = vpop.xlane.xlu0 %984
    %v986 = vsel %vm973, %v961, 0.0
    %987 = vadd.xlane.f32.xlu0 %v986
    %v988 = vpop.xlane.xlu0 %987
    %v989 = vsel %vm973, %v962, 0.0
    %990 = vadd.xlane.f32.xlu0 %v989
    %v991 = vpop.xlane.xlu0 %990
    %v992 = vsel %vm973, %v963, 0.0
    %993 = vadd.xlane.f32.xlu0 %v992
    %v994 = vpop.xlane.xlu0 %993
    %v995 = vsel %vm973, %v964, 0.0
    %996 = vadd.xlane.f32.xlu0 %v995
    %v997 = vpop.xlane.xlu0 %996
    %v998 = vsel %vm973, %v965, 0.0
    %999 = vadd.xlane.f32.xlu0 %v998
    %v1000 = vpop.xlane.xlu0 %999
    %v1001 = vsel %vm973, %v966, 0.0
    %1002 = vadd.xlane.f32.xlu0 %v1001
    %v1003 = vpop.xlane.xlu0 %1002
    %v1004 = vsel %vm973, %v967, 0.0
    %1005 = vadd.xlane.f32.xlu0 %v1004
    %v1006 = vpop.xlane.xlu0 %1005
    %v1007 = vsel %vm973, %v968, 0.0
    %1008 = vadd.xlane.f32.xlu0 %v1007
    %v1009 = vpop.xlane.xlu0 %1008
    %v1010 = vsel %vm973, %v969, 0.0
    %1011 = vadd.xlane.f32.xlu0 %v1010
    %v1012 = vpop.xlane.xlu0 %1011
    %v1013 = vsel %vm973, %v970, 0.0
    %1014 = vadd.xlane.f32.xlu0 %v1013
    %v1015 = vpop.xlane.xlu0 %1014
    %v1016 = vsel %vm973, %v971, 0.0
    %1017 = vadd.xlane.f32.xlu0 %v1016
    %v1018 = vpop.xlane.xlu0 %1017
    %v1019 = vsel %vm973, %v972, 0.0
    %1020 = vadd.xlane.f32.xlu0 %v1019
    %v1021 = vpop.xlane.xlu0 %1020
    %v1022 = vmul.f32 %v976, 0.041666668
    %v1023 = vmul.f32 %v979, 0.041666668
    %v1024 = vmul.f32 %v982, 0.041666668
    %v1025 = vmul.f32 %v985, 0.041666668
    %v1026 = vmul.f32 %v988, 0.041666668
    %v1027 = vmul.f32 %v991, 0.041666668
    %v1028 = vmul.f32 %v994, 0.041666668
    %v1029 = vmul.f32 %v997, 0.041666668
    %v1030 = vmul.f32 %v1000, 0.041666668
    %v1031 = vmul.f32 %v1003, 0.041666668
    %v1032 = vmul.f32 %v1006, 0.041666668
    %v1033 = vmul.f32 %v1009, 0.041666668
    %v1034 = vmul.f32 %v1012, 0.041666668
    %v1035 = vmul.f32 %v1015, 0.041666668
    %v1036 = vmul.f32 %v1018, 0.041666668
    %v1037 = vmul.f32 %v1021, 0.041666668
    %v1038 = vsub.f32 %v919, %v1022
    %v1039 = vsub.f32 %v920, %v1023
    %v1040 = vsub.f32 %v921, %v1024
    %v1041 = vsub.f32 %v922, %v1025
    %v1042 = vsub.f32 %v923, %v1026
    %v1043 = vsub.f32 %v924, %v1027
    %v1044 = vsub.f32 %v925, %v1028
    %v1045 = vsub.f32 %v926, %v1029
    %v1046 = vsub.f32 %v927, %v1030
    %v1047 = vsub.f32 %v928, %v1031
    %v1048 = vsub.f32 %v929, %v1032
    %v1049 = vsub.f32 %v930, %v1033
    %v1050 = vsub.f32 %v931, %v1034
    %v1051 = vsub.f32 %v932, %v1035
    %v1052 = vsub.f32 %v933, %v1036
    %v1053 = vsub.f32 %v934, %v1037
    %v1054 = vmul.f32 %v1038, %v1038
    %v1055 = vmul.f32 %v1039, %v1039
    %v1056 = vmul.f32 %v1040, %v1040
    %v1057 = vmul.f32 %v1041, %v1041
    %v1058 = vmul.f32 %v1042, %v1042
    %v1059 = vmul.f32 %v1043, %v1043
    %v1060 = vmul.f32 %v1044, %v1044
    %v1061 = vmul.f32 %v1045, %v1045
    %v1062 = vmul.f32 %v1046, %v1046
    %v1063 = vmul.f32 %v1047, %v1047
    %v1064 = vmul.f32 %v1048, %v1048
    %v1065 = vmul.f32 %v1049, %v1049
    %v1066 = vmul.f32 %v1050, %v1050
    %v1067 = vmul.f32 %v1051, %v1051
    %v1068 = vmul.f32 %v1052, %v1052
    %v1069 = vmul.f32 %v1053, %v1053
    %v1070 = vsel %vm956, %v1054, 0.0
    %v1071 = vsel %vm956, %v1055, 0.0
    %v1072 = vsel %vm956, %v1056, 0.0
    %v1073 = vsel %vm956, %v1057, 0.0
    %v1074 = vsel %vm956, %v1058, 0.0
    %v1075 = vsel %vm956, %v1059, 0.0
    %v1076 = vsel %vm956, %v1060, 0.0
    %v1077 = vsel %vm956, %v1061, 0.0
    %v1078 = vsel %vm956, %v1062, 0.0
    %v1079 = vsel %vm956, %v1063, 0.0
    %v1080 = vsel %vm956, %v1064, 0.0
    %v1081 = vsel %vm956, %v1065, 0.0
    %v1082 = vsel %vm956, %v1066, 0.0
    %v1083 = vsel %vm956, %v1067, 0.0
    %v1084 = vsel %vm956, %v1068, 0.0
    %v1085 = vsel %vm956, %v1069, 0.0
    %v1086 = vsel %vm973, %v1070, 0.0
    %1087 = vadd.xlane.f32.xlu0 %v1086
    %v1088 = vpop.xlane.xlu0 %1087
    %v1089 = vsel %vm973, %v1071, 0.0
    %1090 = vadd.xlane.f32.xlu0 %v1089
    %v1091 = vpop.xlane.xlu0 %1090
    %v1092 = vsel %vm973, %v1072, 0.0
    %1093 = vadd.xlane.f32.xlu0 %v1092
    %v1094 = vpop.xlane.xlu0 %1093
    %v1095 = vsel %vm973, %v1073, 0.0
    %1096 = vadd.xlane.f32.xlu0 %v1095
    %v1097 = vpop.xlane.xlu0 %1096
    %v1098 = vsel %vm973, %v1074, 0.0
    %1099 = vadd.xlane.f32.xlu0 %v1098
    %v1100 = vpop.xlane.xlu0 %1099
    %v1101 = vsel %vm973, %v1075, 0.0
    %1102 = vadd.xlane.f32.xlu0 %v1101
    %v1103 = vpop.xlane.xlu0 %1102
    %v1104 = vsel %vm973, %v1076, 0.0
    %1105 = vadd.xlane.f32.xlu0 %v1104
    %v1106 = vpop.xlane.xlu0 %1105
    %v1107 = vsel %vm973, %v1077, 0.0
    %1108 = vadd.xlane.f32.xlu0 %v1107
    %v1109 = vpop.xlane.xlu0 %1108
    %v1110 = vsel %vm973, %v1078, 0.0
    %1111 = vadd.xlane.f32.xlu0 %v1110
    %v1112 = vpop.xlane.xlu0 %1111
    %v1113 = vsel %vm973, %v1079, 0.0
    %1114 = vadd.xlane.f32.xlu0 %v1113
    %v1115 = vpop.xlane.xlu0 %1114
    %v1116 = vsel %vm973, %v1080, 0.0
    %1117 = vadd.xlane.f32.xlu0 %v1116
    %v1118 = vpop.xlane.xlu0 %1117
    %v1119 = vsel %vm973, %v1081, 0.0
    %1120 = vadd.xlane.f32.xlu0 %v1119
    %v1121 = vpop.xlane.xlu0 %1120
    %v1122 = vsel %vm973, %v1082, 0.0
    %1123 = vadd.xlane.f32.xlu0 %v1122
    %v1124 = vpop.xlane.xlu0 %1123
    %v1125 = vsel %vm973, %v1083, 0.0
    %1126 = vadd.xlane.f32.xlu0 %v1125
    %v1127 = vpop.xlane.xlu0 %1126
    %v1128 = vsel %vm973, %v1084, 0.0
    %1129 = vadd.xlane.f32.xlu0 %v1128
    %v1130 = vpop.xlane.xlu0 %1129
    %v1131 = vsel %vm973, %v1085, 0.0
    %1132 = vadd.xlane.f32.xlu0 %v1131
    %v1133 = vpop.xlane.xlu0 %1132
    %v1134 = vmul.f32 %v1088, 0.041666668
    %v1135 = vmul.f32 %v1091, 0.041666668
    %v1136 = vmul.f32 %v1094, 0.041666668
    %v1137 = vmul.f32 %v1097, 0.041666668
    %v1138 = vmul.f32 %v1100, 0.041666668
    %v1139 = vmul.f32 %v1103, 0.041666668
    %v1140 = vmul.f32 %v1106, 0.041666668
    %v1141 = vmul.f32 %v1109, 0.041666668
    %v1142 = vmul.f32 %v1112, 0.041666668
    %v1143 = vmul.f32 %v1115, 0.041666668
    %v1144 = vmul.f32 %v1118, 0.041666668
    %v1145 = vmul.f32 %v1121, 0.041666668
    %v1146 = vmul.f32 %v1124, 0.041666668
    %v1147 = vmul.f32 %v1127, 0.041666668
    %v1148 = vmul.f32 %v1130, 0.041666668
    %v1149 = vmul.f32 %v1133, 0.041666668
    %v1150 = vadd.f32 %v1134, 1e-05
    %v1151 = vadd.f32 %v1135, 1e-05
    %v1152 = vadd.f32 %v1136, 1e-05
    %v1153 = vadd.f32 %v1137, 1e-05
    %v1154 = vadd.f32 %v1138, 1e-05
    %v1155 = vadd.f32 %v1139, 1e-05
    %v1156 = vadd.f32 %v1140, 1e-05
    %v1157 = vadd.f32 %v1141, 1e-05
    %v1158 = vadd.f32 %v1142, 1e-05
    %v1159 = vadd.f32 %v1143, 1e-05
    %v1160 = vadd.f32 %v1144, 1e-05
    %v1161 = vadd.f32 %v1145, 1e-05
    %v1162 = vadd.f32 %v1146, 1e-05
    %v1163 = vadd.f32 %v1147, 1e-05
    %v1164 = vadd.f32 %v1148, 1e-05
    %v1165 = vadd.f32 %v1149, 1e-05
    %v1166 = vrsqrt.pop %v1150
    %v1167 = vrsqrt.pop %v1151
    %v1168 = vrsqrt.pop %v1152
    %v1169 = vrsqrt.pop %v1153
    %v1170 = vrsqrt.pop %v1154
    %v1171 = vrsqrt.pop %v1155
    %v1172 = vrsqrt.pop %v1156
    %v1173 = vrsqrt.pop %v1157
    %v1174 = vrsqrt.pop %v1158
    %v1175 = vrsqrt.pop %v1159
    %v1176 = vrsqrt.pop %v1160
    %v1177 = vrsqrt.pop %v1161
    %v1178 = vrsqrt.pop %v1162
    %v1179 = vrsqrt.pop %v1163
    %v1180 = vrsqrt.pop %v1164
    %v1181 = vrsqrt.pop %v1165
    %v1182 = vmul.f32 %v935, %v1166
    %v1183 = vmul.f32 %v936, %v1167
    %v1184 = vmul.f32 %v937, %v1168
    %v1185 = vmul.f32 %v938, %v1169
    %v1186 = vmul.f32 %v939, %v1170
    %v1187 = vmul.f32 %v940, %v1171
    %v1188 = vmul.f32 %v941, %v1172
    %v1189 = vmul.f32 %v942, %v1173
    %v1190 = vmul.f32 %v943, %v1174
    %v1191 = vmul.f32 %v944, %v1175
    %v1192 = vmul.f32 %v945, %v1176
    %v1193 = vmul.f32 %v946, %v1177
    %v1194 = vmul.f32 %v947, %v1178
    %v1195 = vmul.f32 %v948, %v1179
    %v1196 = vmul.f32 %v949, %v1180
    %v1197 = vmul.f32 %v950, %v1181
    %v1198 = vmul.f32 %v1022, %v1182
    %v1199 = vmul.f32 %v1023, %v1183
    %v1200 = vmul.f32 %v1024, %v1184
    %v1201 = vmul.f32 %v1025, %v1185
    %v1202 = vmul.f32 %v1026, %v1186
    %v1203 = vmul.f32 %v1027, %v1187
    %v1204 = vmul.f32 %v1028, %v1188
    %v1205 = vmul.f32 %v1029, %v1189
    %v1206 = vmul.f32 %v1030, %v1190
    %v1207 = vmul.f32 %v1031, %v1191
    %v1208 = vmul.f32 %v1032, %v1192
    %v1209 = vmul.f32 %v1033, %v1193
    %v1210 = vmul.f32 %v1034, %v1194
    %v1211 = vmul.f32 %v1035, %v1195
    %v1212 = vmul.f32 %v1036, %v1196
    %v1213 = vmul.f32 %v1037, %v1197
    %1230 = vrot.lane.b32.xlu0 %v1198, 1
    %v1231 = vpop.permute.xlu0 %1230
    %1232 = vrot.lane.b32.xlu0 %v1199, 1
    %v1233 = vpop.permute.xlu0 %1232
    %1234 = vrot.lane.b32.xlu0 %v1200, 1
    %v1235 = vpop.permute.xlu0 %1234
    %1236 = vrot.lane.b32.xlu0 %v1201, 1
    %v1237 = vpop.permute.xlu0 %1236
    %1238 = vrot.lane.b32.xlu0 %v1202, 1
    %v1239 = vpop.permute.xlu0 %1238
    %1240 = vrot.lane.b32.xlu0 %v1203, 1
    %v1241 = vpop.permute.xlu0 %1240
    %1242 = vrot.lane.b32.xlu0 %v1204, 1
    %v1243 = vpop.permute.xlu0 %1242
    %1244 = vrot.lane.b32.xlu0 %v1205, 1
    %v1245 = vpop.permute.xlu0 %1244
    %1246 = vrot.lane.b32.xlu0 %v1206, 1
    %v1247 = vpop.permute.xlu0 %1246
    %1248 = vrot.lane.b32.xlu0 %v1207, 1
    %v1249 = vpop.permute.xlu0 %1248
    %1250 = vrot.lane.b32.xlu0 %v1208, 1
    %v1251 = vpop.permute.xlu0 %1250
    %1252 = vrot.lane.b32.xlu0 %v1209, 1
    %v1253 = vpop.permute.xlu0 %1252
    %1254 = vrot.lane.b32.xlu0 %v1210, 1
    %v1255 = vpop.permute.xlu0 %1254
    %1256 = vrot.lane.b32.xlu0 %v1211, 1
    %v1257 = vpop.permute.xlu0 %1256
    %1258 = vrot.lane.b32.xlu0 %v1212, 1
    %v1259 = vpop.permute.xlu0 %1258
    %1260 = vrot.lane.b32.xlu0 %v1213, 1
    %v1261 = vpop.permute.xlu0 %1260
    %v1278 = vsub.f32 %v935, %v1231
    %v1279 = vsub.f32 %v936, %v1233
    %v1280 = vsub.f32 %v937, %v1235
    %v1281 = vsub.f32 %v938, %v1237
    %v1282 = vsub.f32 %v939, %v1239
    %v1283 = vsub.f32 %v940, %v1241
    %v1284 = vsub.f32 %v941, %v1243
    %v1285 = vsub.f32 %v942, %v1245
    %v1286 = vsub.f32 %v943, %v1247
    %v1287 = vsub.f32 %v944, %v1249
    %v1288 = vsub.f32 %v945, %v1251
    %v1289 = vsub.f32 %v946, %v1253
    %v1290 = vsub.f32 %v947, %v1255
    %v1291 = vsub.f32 %v948, %v1257
    %v1292 = vsub.f32 %v949, %v1259
    %v1293 = vsub.f32 %v950, %v1261
    %1295 = vset.pattern.permute.xlu0 0
    %1296 = vperm.xlu0 %1295, %v1182
    %v1297 = vpop.permute.xlu0 %1296
    %1300 = vset.pattern.permute.xlu0 0
    %1301 = vperm.xlu0 %1300, %v1183
    %v1302 = vpop.permute.xlu0 %1301
    %1305 = vset.pattern.permute.xlu0 0
    %1306 = vperm.xlu0 %1305, %v1184
    %v1307 = vpop.permute.xlu0 %1306
    %1310 = vset.pattern.permute.xlu0 0
    %1311 = vperm.xlu0 %1310, %v1185
    %v1312 = vpop.permute.xlu0 %1311
    %1315 = vset.pattern.permute.xlu0 0
    %1316 = vperm.xlu0 %1315, %v1186
    %v1317 = vpop.permute.xlu0 %1316
    %1320 = vset.pattern.permute.xlu0 0
    %1321 = vperm.xlu0 %1320, %v1187
    %v1322 = vpop.permute.xlu0 %1321
    %1325 = vset.pattern.permute.xlu0 0
    %1326 = vperm.xlu0 %1325, %v1188
    %v1327 = vpop.permute.xlu0 %1326
    %1330 = vset.pattern.permute.xlu0 0
    %1331 = vperm.xlu0 %1330, %v1189
    %v1332 = vpop.permute.xlu0 %1331
    %1335 = vset.pattern.permute.xlu0 0
    %1336 = vperm.xlu0 %1335, %v1190
    %v1337 = vpop.permute.xlu0 %1336
    %1340 = vset.pattern.permute.xlu0 0
    %1341 = vperm.xlu0 %1340, %v1191
    %v1342 = vpop.permute.xlu0 %1341
    %1345 = vset.pattern.permute.xlu0 0
    %1346 = vperm.xlu0 %1345, %v1192
    %v1347 = vpop.permute.xlu0 %1346
    %1350 = vset.pattern.permute.xlu0 0
    %1351 = vperm.xlu0 %1350, %v1193
    %v1352 = vpop.permute.xlu0 %1351
    %1355 = vset.pattern.permute.xlu0 0
    %1356 = vperm.xlu0 %1355, %v1194
    %v1357 = vpop.permute.xlu0 %1356
    %1360 = vset.pattern.permute.xlu0 0
    %1361 = vperm.xlu0 %1360, %v1195
    %v1362 = vpop.permute.xlu0 %1361
    %1365 = vset.pattern.permute.xlu0 0
    %1366 = vperm.xlu0 %1365, %v1196
    %v1367 = vpop.permute.xlu0 %1366
    %1370 = vset.pattern.permute.xlu0 0
    %1371 = vperm.xlu0 %1370, %v1197
    %v1372 = vpop.permute.xlu0 %1371
    %v1374 = vmul.f32 %v919, %v1297
    %v1375 = vmul.f32 %v920, %v1302
    %v1376 = vmul.f32 %v921, %v1307
    %v1377 = vmul.f32 %v922, %v1312
    %v1378 = vmul.f32 %v923, %v1317
    %v1379 = vmul.f32 %v924, %v1322
    %v1380 = vmul.f32 %v925, %v1327
    %v1381 = vmul.f32 %v926, %v1332
    %v1382 = vmul.f32 %v927, %v1337
    %v1383 = vmul.f32 %v928, %v1342
    %v1384 = vmul.f32 %v929, %v1347
    %v1385 = vmul.f32 %v930, %v1352
    %v1386 = vmul.f32 %v931, %v1357
    %v1387 = vmul.f32 %v932, %v1362
    %v1388 = vmul.f32 %v933, %v1367
    %v1389 = vmul.f32 %v934, %v1372
    %1391 = vset.pattern.permute.xlu0 1
    %1392 = vperm.xlu0 %1391, %v1278
    %v1393 = vpop.permute.xlu0 %1392
    %1396 = vset.pattern.permute.xlu0 1
    %1397 = vperm.xlu0 %1396, %v1279
    %v1398 = vpop.permute.xlu0 %1397
    %1401 = vset.pattern.permute.xlu0 1
    %1402 = vperm.xlu0 %1401, %v1280
    %v1403 = vpop.permute.xlu0 %1402
    %1406 = vset.pattern.permute.xlu0 1
    %1407 = vperm.xlu0 %1406, %v1281
    %v1408 = vpop.permute.xlu0 %1407
    %1411 = vset.pattern.permute.xlu0 1
    %1412 = vperm.xlu0 %1411, %v1282
    %v1413 = vpop.permute.xlu0 %1412
    %1416 = vset.pattern.permute.xlu0 1
    %1417 = vperm.xlu0 %1416, %v1283
    %v1418 = vpop.permute.xlu0 %1417
    %1421 = vset.pattern.permute.xlu0 1
    %1422 = vperm.xlu0 %1421, %v1284
    %v1423 = vpop.permute.xlu0 %1422
    %1426 = vset.pattern.permute.xlu0 1
    %1427 = vperm.xlu0 %1426, %v1285
    %v1428 = vpop.permute.xlu0 %1427
    %1431 = vset.pattern.permute.xlu0 1
    %1432 = vperm.xlu0 %1431, %v1286
    %v1433 = vpop.permute.xlu0 %1432
    %1436 = vset.pattern.permute.xlu0 1
    %1437 = vperm.xlu0 %1436, %v1287
    %v1438 = vpop.permute.xlu0 %1437
    %1441 = vset.pattern.permute.xlu0 1
    %1442 = vperm.xlu0 %1441, %v1288
    %v1443 = vpop.permute.xlu0 %1442
    %1446 = vset.pattern.permute.xlu0 1
    %1447 = vperm.xlu0 %1446, %v1289
    %v1448 = vpop.permute.xlu0 %1447
    %1451 = vset.pattern.permute.xlu0 1
    %1452 = vperm.xlu0 %1451, %v1290
    %v1453 = vpop.permute.xlu0 %1452
    %1456 = vset.pattern.permute.xlu0 1
    %1457 = vperm.xlu0 %1456, %v1291
    %v1458 = vpop.permute.xlu0 %1457
    %1461 = vset.pattern.permute.xlu0 1
    %1462 = vperm.xlu0 %1461, %v1292
    %v1463 = vpop.permute.xlu0 %1462
    %1466 = vset.pattern.permute.xlu0 1
    %1467 = vperm.xlu0 %1466, %v1293
    %v1468 = vpop.permute.xlu0 %1467
    %v1470 = vadd.f32 %v1374, %v1393
    %v1471 = vadd.f32 %v1375, %v1398
    %v1472 = vadd.f32 %v1376, %v1403
    %v1473 = vadd.f32 %v1377, %v1408
    %v1474 = vadd.f32 %v1378, %v1413
    %v1475 = vadd.f32 %v1379, %v1418
    %v1476 = vadd.f32 %v1380, %v1423
    %v1477 = vadd.f32 %v1381, %v1428
    %v1478 = vadd.f32 %v1382, %v1433
    %v1479 = vadd.f32 %v1383, %v1438
    %v1480 = vadd.f32 %v1384, %v1443
    %v1481 = vadd.f32 %v1385, %v1448
    %v1482 = vadd.f32 %v1386, %v1453
    %v1483 = vadd.f32 %v1387, %v1458
    %v1484 = vadd.f32 %v1388, %v1463
    %v1485 = vadd.f32 %v1389, %v1468
    %v1486 = vmul.f32 %v1470, 0.01
    %v1487 = vmul.f32 %v1471, 0.01
    %v1488 = vmul.f32 %v1472, 0.01
    %v1489 = vmul.f32 %v1473, 0.01
    %v1490 = vmul.f32 %v1474, 0.01
    %v1491 = vmul.f32 %v1475, 0.01
    %v1492 = vmul.f32 %v1476, 0.01
    %v1493 = vmul.f32 %v1477, 0.01
    %v1494 = vmul.f32 %v1478, 0.01
    %v1495 = vmul.f32 %v1479, 0.01
    %v1496 = vmul.f32 %v1480, 0.01
    %v1497 = vmul.f32 %v1481, 0.01
    %v1498 = vmul.f32 %v1482, 0.01
    %v1499 = vmul.f32 %v1483, 0.01
    %v1500 = vmul.f32 %v1484, 0.01
    %v1501 = vmul.f32 %v1485, 0.01
    %v1502 = vmax.f32 %v1470, %v1486
    %v1503 = vmax.f32 %v1471, %v1487
    %v1504 = vmax.f32 %v1472, %v1488
    %v1505 = vmax.f32 %v1473, %v1489
    %v1506 = vmax.f32 %v1474, %v1490
    %v1507 = vmax.f32 %v1475, %v1491
    %v1508 = vmax.f32 %v1476, %v1492
    %v1509 = vmax.f32 %v1477, %v1493
    %v1510 = vmax.f32 %v1478, %v1494
    %v1511 = vmax.f32 %v1479, %v1495
    %v1512 = vmax.f32 %v1480, %v1496
    %v1513 = vmax.f32 %v1481, %v1497
    %v1514 = vmax.f32 %v1482, %v1498
    %v1515 = vmax.f32 %v1483, %v1499
    %v1516 = vmax.f32 %v1484, %v1500
    %v1517 = vmax.f32 %v1485, %v1501
    %v1518 = vpack.c.bf16 %v1503, %v1502
    %v1519 = vpack.c.bf16 %v1505, %v1504
    %v1520 = vpack.c.bf16 %v1507, %v1506
    %v1521 = vpack.c.bf16 %v1509, %v1508
    %v1522 = vpack.c.bf16 %v1511, %v1510
    %v1523 = vpack.c.bf16 %v1513, %v1512
    %v1524 = vpack.c.bf16 %v1515, %v1514
    %v1525 = vpack.c.bf16 %v1517, %v1516
    %v1526 = vld [vmem:[#allocation2 + $0xd8] sm:$0xf]
    %v1527 = vld [vmem:[#allocation2 + $0xe0] sm:$0xf]
    %1536 = vrot.lane.b32.xlu0 %v1518, 127
    %v1537 = vpop.permute.xlu0 %1536
    %1538 = vrot.lane.b32.xlu0 %v1519, 127
    %v1539 = vpop.permute.xlu0 %1538
    %1540 = vrot.lane.b32.xlu0 %v1520, 127
    %v1541 = vpop.permute.xlu0 %1540
    %1542 = vrot.lane.b32.xlu0 %v1521, 127
    %v1543 = vpop.permute.xlu0 %1542
    %1544 = vrot.lane.b32.xlu0 %v1522, 127
    %v1545 = vpop.permute.xlu0 %1544
    %1546 = vrot.lane.b32.xlu0 %v1523, 127
    %v1547 = vpop.permute.xlu0 %1546
    %1548 = vrot.lane.b32.xlu0 %v1524, 127
    %v1549 = vpop.permute.xlu0 %1548
    %1550 = vrot.lane.b32.xlu0 %v1525, 127
    %v1551 = vpop.permute.xlu0 %1550
    %1560 = vmatprep.subr.bf16.mxu0 0
    %1561 = vmatpush1.bf16.msra.mxu0 %v1551
    %1562 = vmatprep.subr.bf16.mxu0 0
    %1563 = vmatpush1.bf16.msra.mxu0 %v1549
    %1564 = vmatprep.subr.bf16.mxu0 0
    %1565 = vmatpush1.bf16.msra.mxu0 %v1547
    %1566 = vmatprep.subr.bf16.mxu0 0
    %1567 = vmatpush1.bf16.msra.mxu0 %v1545
    %1568 = vmatprep.subr.bf16.mxu0 0
    %1569 = vmatpush1.bf16.msra.mxu0 %v1543
    %1570 = vmatprep.subr.bf16.mxu0 0
    %1571 = vmatpush1.bf16.msra.mxu0 %v1541
    %1572 = vmatprep.subr.bf16.mxu0 0
    %1573 = vmatpush1.bf16.msra.mxu0 %v1539
    %1574 = vmatprep.subr.bf16.mxu0 0
    %1575 = vmatpush1.bf16.msra.mxu0 %v1537
    %1576 = vmatprep.subr.bf16.mxu0 0
    %1577 = vmatpush2.bf16.msra.mxu0 0
    %1578 = vmatprep.subr.bf16.mxu0 0
    %1579 = vmatpush2.bf16.msra.mxu0 0
    %1580 = vmatprep.subr.bf16.mxu0 0
    %1581 = vmatpush2.bf16.msra.mxu0 0
    %1582 = vmatprep.subr.bf16.mxu0 0
    %1583 = vmatpush2.bf16.msra.mxu0 0
    %1584 = vmatprep.subr.bf16.mxu0 0
    %1585 = vmatpush2.bf16.msra.mxu0 0
    %1586 = vmatprep.subr.bf16.mxu0 0
    %1587 = vmatpush2.bf16.msra.mxu0 0
    %1588 = vmatprep.subr.bf16.mxu0 0
    %1589 = vmatpush2.bf16.msra.mxu0 0
    %1590 = vmatprep.subr.bf16.mxu0 0
    %1591 = vmatpush2.bf16.msra.mxu0 0
    %1592 = vmatprep.mubr.bf16.mxu0 0
    %1593 = vmatmul.mubr.bf16.gmra.mxu0 %v1527
    %v1594 = vpop.f32.mrf.mxu0
    %v1595 = vadd.f32 0.0, %v1594
    %v1596 = vpop.f32.mrf.mxu0
    %v1597 = vpop.f32.mrf.mxu0
    %v1598 = vpop.f32.mrf.mxu0
    %1599 = vdwg.mxu0
    %1600 = vmatprep.subr.bf16.mxu0 0
    %1601 = vmatpush1.bf16.msra.mxu0 %v1525
    %1602 = vmatprep.subr.bf16.mxu0 0
    %1603 = vmatpush1.bf16.msra.mxu0 %v1524
    %1604 = vmatprep.subr.bf16.mxu0 0
    %1605 = vmatpush1.bf16.msra.mxu0 %v1523
    %1606 = vmatprep.subr.bf16.mxu0 0
    %1607 = vmatpush1.bf16.msra.mxu0 %v1522
    %1608 = vmatprep.subr.bf16.mxu0 0
    %1609 = vmatpush1.bf16.msra.mxu0 %v1521
    %1610 = vmatprep.subr.bf16.mxu0 0
    %1611 = vmatpush1.bf16.msra.mxu0 %v1520
    %1612 = vmatprep.subr.bf16.mxu0 0
    %1613 = vmatpush1.bf16.msra.mxu0 %v1519
    %1614 = vmatprep.subr.bf16.mxu0 0
    %1615 = vmatpush1.bf16.msra.mxu0 %v1518
    %1616 = vmatprep.subr.bf16.mxu0 0
    %1617 = vmatpush2.bf16.msra.mxu0 0
    %1618 = vmatprep.subr.bf16.mxu0 0
    %1619 = vmatpush2.bf16.msra.mxu0 0
    %1620 = vmatprep.subr.bf16.mxu0 0
    %1621 = vmatpush2.bf16.msra.mxu0 0
    %1622 = vmatprep.subr.bf16.mxu0 0
    %1623 = vmatpush2.bf16.msra.mxu0 0
    %1624 = vmatprep.subr.bf16.mxu0 0
    %1625 = vmatpush2.bf16.msra.mxu0 0
    %1626 = vmatprep.subr.bf16.mxu0 0
    %1627 = vmatpush2.bf16.msra.mxu0 0
    %1628 = vmatprep.subr.bf16.mxu0 0
    %1629 = vmatpush2.bf16.msra.mxu0 0
    %1630 = vmatprep.subr.bf16.mxu0 0
    %1631 = vmatpush2.bf16.msra.mxu0 0
    %1632 = vmatprep.mubr.bf16.mxu0 0
    %1633 = vmatmul.mubr.bf16.gmra.mxu0 %v1526
    %v1634 = vpop.f32.mrf.mxu0
    %v1635 = vadd.f32 %v1595, %v1634
    %v1636 = vpop.f32.mrf.mxu0
    %v1637 = vpop.f32.mrf.mxu0
    %v1638 = vpop.f32.mrf.mxu0
    %1639 = vdwg.mxu0
    %v1640 = vld [vmem:[#allocation2 + $0xe8] sm:$0xf]
    %1641 = vrot.lane.b32.xlu0 %v1518, 126
    %v1642 = vpop.permute.xlu0 %1641
    %1643 = vrot.lane.b32.xlu0 %v1519, 126
    %v1644 = vpop.permute.xlu0 %1643
    %1645 = vrot.lane.b32.xlu0 %v1520, 126
    %v1646 = vpop.permute.xlu0 %1645
    %1647 = vrot.lane.b32.xlu0 %v1521, 126
    %v1648 = vpop.permute.xlu0 %1647
    %1649 = vrot.lane.b32.xlu0 %v1522, 126
    %v1650 = vpop.permute.xlu0 %1649
    %1651 = vrot.lane.b32.xlu0 %v1523, 126
    %v1652 = vpop.permute.xlu0 %1651
    %1653 = vrot.lane.b32.xlu0 %v1524, 126
    %v1654 = vpop.permute.xlu0 %1653
    %1655 = vrot.lane.b32.xlu0 %v1525, 126
    %v1656 = vpop.permute.xlu0 %1655
    %1665 = vmatprep.subr.bf16.mxu0 0
    %1666 = vmatpush1.bf16.msra.mxu0 %v1656
    %1667 = vmatprep.subr.bf16.mxu0 0
    %1668 = vmatpush1.bf16.msra.mxu0 %v1654
    %1669 = vmatprep.subr.bf16.mxu0 0
    %1670 = vmatpush1.bf16.msra.mxu0 %v1652
    %1671 = vmatprep.subr.bf16.mxu0 0
    %1672 = vmatpush1.bf16.msra.mxu0 %v1650
    %1673 = vmatprep.subr.bf16.mxu0 0
    %1674 = vmatpush1.bf16.msra.mxu0 %v1648
    %1675 = vmatprep.subr.bf16.mxu0 0
    %1676 = vmatpush1.bf16.msra.mxu0 %v1646
    %1677 = vmatprep.subr.bf16.mxu0 0
    %1678 = vmatpush1.bf16.msra.mxu0 %v1644
    %1679 = vmatprep.subr.bf16.mxu0 0
    %1680 = vmatpush1.bf16.msra.mxu0 %v1642
    %1681 = vmatprep.subr.bf16.mxu0 0
    %1682 = vmatpush2.bf16.msra.mxu0 0
    %1683 = vmatprep.subr.bf16.mxu0 0
    %1684 = vmatpush2.bf16.msra.mxu0 0
    %1685 = vmatprep.subr.bf16.mxu0 0
    %1686 = vmatpush2.bf16.msra.mxu0 0
    %1687 = vmatprep.subr.bf16.mxu0 0
    %1688 = vmatpush2.bf16.msra.mxu0 0
    %1689 = vmatprep.subr.bf16.mxu0 0
    %1690 = vmatpush2.bf16.msra.mxu0 0
    %1691 = vmatprep.subr.bf16.mxu0 0
    %1692 = vmatpush2.bf16.msra.mxu0 0
    %1693 = vmatprep.subr.bf16.mxu0 0
    %1694 = vmatpush2.bf16.msra.mxu0 0
    %1695 = vmatprep.subr.bf16.mxu0 0
    %1696 = vmatpush2.bf16.msra.mxu0 0
    %1697 = vmatprep.mubr.bf16.mxu0 0
    %1698 = vmatmul.mubr.bf16.gmra.mxu0 %v1640
    %v1699 = vpop.f32.mrf.mxu0
    %v1700 = vadd.f32 0.0, %v1699
    %v1701 = vpop.f32.mrf.mxu0
    %v1702 = vpop.f32.mrf.mxu0
    %v1703 = vpop.f32.mrf.mxu0
    %1704 = vdwg.mxu0
    %v1705 = vadd.f32 %v1635, %v1700
    %v1706 = vld [vmem:[%s2 + $0x88] sm:$0xff]
    %vm1707 = vcmp.lt.s32.totalorder %v327, 10
    %vm1708 = vcmp.lt.s32.totalorder %v327, 24
    %vm1709 = vmand %vm329, %vm1708
    %vm1710 = vmor %vm1707, %vm1709
    %v1711 = vsel %vm1710, 1, 0
    %vm1712 = vcmp.eq.s32.totalorder %v1711, 1
    %v1713 = vsel %vm1712, %v1705, 0.0
    %vm1714 = vcmask 195584
    %v1715 = vsel %vm1714, %v1713, 0.0
    %1716 = vadd.xlane.f32.xlu0 %v1715
    %v1717 = vpop.xlane.xlu0 %1716
    %v1718 = vmul.f32 %v1717, 0.05
    %v1719 = vsub.f32 %v1705, %v1718
    %v1720 = vmul.f32 %v1719, %v1719
    %v1721 = vsel %vm1712, %v1720, 0.0
    %v1722 = vsel %vm1714, %v1721, 0.0
    %1723 = vadd.xlane.f32.xlu0 %v1722
    %v1724 = vpop.xlane.xlu0 %1723
    %v1725 = vmul.f32 %v1724, 0.05
    %v1726 = vadd.f32 %v1725, 1e-05
    %v1727 = vrsqrt.pop %v1726
    %v1728 = vmul.f32 %v1706, %v1727
    %v1729 = vmul.f32 %v1718, %v1728
    %1731 = vrot.lane.b32.xlu0 %v1729, 1
    %v1732 = vpop.permute.xlu0 %1731
    %v1734 = vsub.f32 %v1706, %v1732
    %1736 = vset.pattern.permute.xlu0 0
    %1737 = vperm.xlu0 %1736, %v1728
    %v1738 = vpop.permute.xlu0 %1737
    %v1740 = vmul.f32 %v1705, %v1738
    %1742 = vset.pattern.permute.xlu0 1
    %1743 = vperm.xlu0 %1742, %v1734
    %v1744 = vpop.permute.xlu0 %1743
    %v1746 = vadd.f32 %v1740, %v1744
    %v1747 = vmul.f32 %v1746, 0.01
    %v1748 = vmax.f32 %v1746, %v1747
    %v1749 = vpack.c.bf16 %v1748, %v1748
    %v1750 = vld [vmem:[#allocation2 + $0xf0] sm:$0xf]
    %v1751 = vld [vmem:[#allocation2 + $0xf8] sm:$0xf]
    %1753 = vrot.lane.b32.xlu0 %v1749, 127
    %v1754 = vpop.permute.xlu0 %1753
    %v1756 = vsel %vm447, %v1751, 0
    %v1759 = vsel %vm472, %v1754, 0
    %1761 = vmatprep.subr.bf16.mxu0 0
    %1762 = vmatpush1.bf16.msra.mxu0 0
    %1763 = vmatprep.subr.bf16.mxu0 0
    %1764 = vmatpush1.bf16.msra.mxu0 0
    %1765 = vmatprep.subr.bf16.mxu0 0
    %1766 = vmatpush1.bf16.msra.mxu0 0
    %1767 = vmatprep.subr.bf16.mxu0 0
    %1768 = vmatpush1.bf16.msra.mxu0 0
    %1769 = vmatprep.subr.bf16.mxu0 0
    %1770 = vmatpush1.bf16.msra.mxu0 0
    %1771 = vmatprep.subr.bf16.mxu0 0
    %1772 = vmatpush1.bf16.msra.mxu0 0
    %1773 = vmatprep.subr.bf16.mxu0 0
    %1774 = vmatpush1.bf16.msra.mxu0 0
    %1775 = vmatprep.subr.bf16.mxu0 0
    %1776 = vmatpush1.bf16.msra.mxu0 %v1759
    %1777 = vmatprep.subr.bf16.mxu0 0
    %1778 = vmatpush2.bf16.msra.mxu0 0
    %1779 = vmatprep.subr.bf16.mxu0 0
    %1780 = vmatpush2.bf16.msra.mxu0 0
    %1781 = vmatprep.subr.bf16.mxu0 0
    %1782 = vmatpush2.bf16.msra.mxu0 0
    %1783 = vmatprep.subr.bf16.mxu0 0
    %1784 = vmatpush2.bf16.msra.mxu0 0
    %1785 = vmatprep.subr.bf16.mxu0 0
    %1786 = vmatpush2.bf16.msra.mxu0 0
    %1787 = vmatprep.subr.bf16.mxu0 0
    %1788 = vmatpush2.bf16.msra.mxu0 0
    %1789 = vmatprep.subr.bf16.mxu0 0
    %1790 = vmatpush2.bf16.msra.mxu0 0
    %1791 = vmatprep.subr.bf16.mxu0 0
    %1792 = vmatpush2.bf16.msra.mxu0 0
    %1793 = vmatprep.mubr.bf16.mxu0 0
    %1794 = vmatmul.mubr.bf16.gmra.mxu0 %v1756
    %v1795 = vpop.f32.mrf.mxu0
    %v1796 = vadd.f32 0.0, %v1795
    %v1797 = vpop.f32.mrf.mxu0
    %v1798 = vpop.f32.mrf.mxu0
    %v1799 = vpop.f32.mrf.mxu0
    %1800 = vdwg.mxu0
    %v1802 = vsel %vm447, %v1750, 0
    %v1805 = vsel %vm472, %v1749, 0
    %1807 = vmatprep.subr.bf16.mxu0 0
    %1808 = vmatpush1.bf16.msra.mxu0 0
    %1809 = vmatprep.subr.bf16.mxu0 0
    %1810 = vmatpush1.bf16.msra.mxu0 0
    %1811 = vmatprep.subr.bf16.mxu0 0
    %1812 = vmatpush1.bf16.msra.mxu0 0
    %1813 = vmatprep.subr.bf16.mxu0 0
    %1814 = vmatpush1.bf16.msra.mxu0 0
    %1815 = vmatprep.subr.bf16.mxu0 0
    %1816 = vmatpush1.bf16.msra.mxu0 0
    %1817 = vmatprep.subr.bf16.mxu0 0
    %1818 = vmatpush1.bf16.msra.mxu0 0
    %1819 = vmatprep.subr.bf16.mxu0 0
    %1820 = vmatpush1.bf16.msra.mxu0 0
    %1821 = vmatprep.subr.bf16.mxu0 0
    %1822 = vmatpush1.bf16.msra.mxu0 %v1805
    %1823 = vmatprep.subr.bf16.mxu0 0
    %1824 = vmatpush2.bf16.msra.mxu0 0
    %1825 = vmatprep.subr.bf16.mxu0 0
    %1826 = vmatpush2.bf16.msra.mxu0 0
    %1827 = vmatprep.subr.bf16.mxu0 0
    %1828 = vmatpush2.bf16.msra.mxu0 0
    %1829 = vmatprep.subr.bf16.mxu0 0
    %1830 = vmatpush2.bf16.msra.mxu0 0
    %1831 = vmatprep.subr.bf16.mxu0 0
    %1832 = vmatpush2.bf16.msra.mxu0 0
    %1833 = vmatprep.subr.bf16.mxu0 0
    %1834 = vmatpush2.bf16.msra.mxu0 0
    %1835 = vmatprep.subr.bf16.mxu0 0
    %1836 = vmatpush2.bf16.msra.mxu0 0
    %1837 = vmatprep.subr.bf16.mxu0 0
    %1838 = vmatpush2.bf16.msra.mxu0 0
    %1839 = vmatprep.mubr.bf16.mxu0 0
    %1840 = vmatmul.mubr.bf16.gmra.mxu0 %v1802
    %v1841 = vpop.f32.mrf.mxu0
    %v1842 = vadd.f32 %v1796, %v1841
    %v1843 = vpop.f32.mrf.mxu0
    %v1844 = vpop.f32.mrf.mxu0
    %v1845 = vpop.f32.mrf.mxu0
    %1846 = vdwg.mxu0
    %v1847 = vld [vmem:[#allocation2 + $0x100] sm:$0xf]
    %1848 = vrot.lane.b32.xlu0 %v1749, 126
    %v1849 = vpop.permute.xlu0 %1848
    %v1851 = vsel %vm447, %v1847, 0
    %v1854 = vsel %vm472, %v1849, 0
    %1856 = vmatprep.subr.bf16.mxu0 0
    %1857 = vmatpush1.bf16.msra.mxu0 0
    %1858 = vmatprep.subr.bf16.mxu0 0
    %1859 = vmatpush1.bf16.msra.mxu0 0
    %1860 = vmatprep.subr.bf16.mxu0 0
    %1861 = vmatpush1.bf16.msra.mxu0 0
    %1862 = vmatprep.subr.bf16.mxu0 0
    %1863 = vmatpush1.bf16.msra.mxu0 0
    %1864 = vmatprep.subr.bf16.mxu0 0
    %1865 = vmatpush1.bf16.msra.mxu0 0
    %1866 = vmatprep.subr.bf16.mxu0 0
    %1867 = vmatpush1.bf16.msra.mxu0 0
    %1868 = vmatprep.subr.bf16.mxu0 0
    %1869 = vmatpush1.bf16.msra.mxu0 0
    %1870 = vmatprep.subr.bf16.mxu0 0
    %1871 = vmatpush1.bf16.msra.mxu0 %v1854
    %1872 = vmatprep.subr.bf16.mxu0 0
    %1873 = vmatpush2.bf16.msra.mxu0 0
    %1874 = vmatprep.subr.bf16.mxu0 0
    %1875 = vmatpush2.bf16.msra.mxu0 0
    %1876 = vmatprep.subr.bf16.mxu0 0
    %1877 = vmatpush2.bf16.msra.mxu0 0
    %1878 = vmatprep.subr.bf16.mxu0 0
    %1879 = vmatpush2.bf16.msra.mxu0 0
    %1880 = vmatprep.subr.bf16.mxu0 0
    %1881 = vmatpush2.bf16.msra.mxu0 0
    %1882 = vmatprep.subr.bf16.mxu0 0
    %1883 = vmatpush2.bf16.msra.mxu0 0
    %1884 = vmatprep.subr.bf16.mxu0 0
    %1885 = vmatpush2.bf16.msra.mxu0 0
    %1886 = vmatprep.subr.bf16.mxu0 0
    %1887 = vmatpush2.bf16.msra.mxu0 0
    %1888 = vmatprep.mubr.bf16.mxu0 0
    %1889 = vmatmul.mubr.bf16.gmra.mxu0 %v1851
    %v1890 = vpop.f32.mrf.mxu0
    %v1891 = vadd.f32 0.0, %v1890
    %v1892 = vpop.f32.mrf.mxu0
    %v1893 = vpop.f32.mrf.mxu0
    %v1894 = vpop.f32.mrf.mxu0
    %1895 = vdwg.mxu0
    %v1896 = vadd.f32 %v1842, %v1891
    %v1897 = vld [vmem:[%s2 + $0x90] sm:$0xff]
    %vm1898 = vcmp.lt.s32.totalorder %v327, 8
    %vm1899 = vcmp.lt.s32.totalorder %v327, 22
    %vm1900 = vmand %vm329, %vm1899
    %vm1901 = vmor %vm1898, %vm1900
    %v1902 = vsel %vm1901, 1, 0
    %vm1903 = vcmp.eq.s32.totalorder %v1902, 1
    %v1904 = vsel %vm1903, %v1896, 0.0
    %vm1905 = vcmask 179200
    %v1906 = vsel %vm1905, %v1904, 0.0
    %1907 = vadd.xlane.f32.xlu0 %v1906
    %v1908 = vpop.xlane.xlu0 %1907
    %v1909 = vmul.f32 %v1908, 0.0625
    %v1910 = vsub.f32 %v1896, %v1909
    %v1911 = vmul.f32 %v1910, %v1910
    %v1912 = vsel %vm1903, %v1911, 0.0
    %v1913 = vsel %vm1905, %v1912, 0.0
    %1914 = vadd.xlane.f32.xlu0 %v1913
    %v1915 = vpop.xlane.xlu0 %1914
    %v1916 = vmul.f32 %v1915, 0.0625
    %v1917 = vadd.f32 %v1916, 1e-05
    %v1918 = vrsqrt.pop %v1917
    %v1919 = vmul.f32 %v1897, %v1918
    %v1920 = vmul.f32 %v1909, %v1919
    %1922 = vrot.lane.b32.xlu0 %v1920, 1
    %v1923 = vpop.permute.xlu0 %1922
    %v1925 = vsub.f32 %v1897, %v1923
    %1927 = vset.pattern.permute.xlu0 0
    %1928 = vperm.xlu0 %1927, %v1919
    %v1929 = vpop.permute.xlu0 %1928
    %v1931 = vmul.f32 %v1896, %v1929
    %1933 = vset.pattern.permute.xlu0 1
    %1934 = vperm.xlu0 %1933, %v1925
    %v1935 = vpop.permute.xlu0 %1934
    %v1937 = vadd.f32 %v1931, %v1935
    %1938 = vst.msk [vmem:[#allocation5] sm:$0xff] %vm447, %v1937
    %1940 = vrot.lane.b32.xlu0 %v1937, 114
    %v1941 = vpop.permute.xlu0 %1940
    %s1943 = scalar_lea.vmem [#allocation5], 8
    %1944 = vst.msk [vmem:[%s1943] sm:$0xff] %vm447, %v1941
    // Predicated region
    $region18: #{tpu_custom_call.1} parent=1 // pred_check
      _
    $region19: #{tpu_custom_call.1} parent=1 // pred_check_branch
      %1946 = sbr.rel (0) target = $region21
    $region20: #{tpu_custom_call.1} parent=1 // pred_region
      %s1948 = ssub.s32 256, 256
      %1949 = vsyncadd [#allocation4], %s1948
      %s1950 = sshll.u32 [#allocation5], 4
      %s1951 = int_to_ptr.vmem [resolvable:$true] %s1950
      %1956 = dma.vmem_to_hbm [thread:$0]  %s1951, 256, %s3, [#allocation4], 128, 128, 8
    $region21: #{tpu_custom_call.1} parent=1 // pred_fallthru
      _
    // Predicated region
    $region22: #{tpu_custom_call.1} parent=1 // pred_check
      _
    $region23: #{tpu_custom_call.1} parent=1 // pred_check_branch
      %1958 = sbr.rel (0) target = $region25
    $region24: #{tpu_custom_call.1} parent=1 // pred_region
      %1959 = dma.done [#allocation4], 256
    $region25: #{tpu_custom_call.1} parent=1 // pred_fallthru
      _
    %1960 = vsyncpa [#allocation3], 1
    %1961 = vsyncpa [#allocation4], 1

</llo_original>
